<compile_context>
chip_gen: v7x
topology: tpu7x:2x2x1
jax: 0.10.0
libtpu: 0.0.40
codegen_flags: <defaults>
</compile_context>

<pallas_src>
import functools

import jax
import jax.numpy as jnp
import numpy as np
from jax.experimental import pallas as pl
from jax.experimental.pallas import tpu as pltpu


def _ela_kernel(x_ref, p_ref, pool_ref, eh_ref, ew_ref, gr_ref, gb_ref, o_ref,
                *, kernel_size, h, w, eps):
    """x_ref/o_ref: (Cb, h*w) lane-dense.
    p_ref   : (Cb, K+2) f32  = [conv taps | gamma | beta]
    pool_ref: (h*w, hp+wp)   0/1 fused width/height pooling matrix (conv zero-pad folded in)
    eh_ref  : (h, h*w) 0/1   gate broadcast over rows;  ew_ref: (w, h*w) over cols
    gr_ref  : (G, Cb) f32    per-group averaging (1/cpg entries)
    gb_ref  : (Cb, G) f32    group -> channel broadcast (0/1 entries)
    """
    K = kernel_size
    pad = K // 2
    hp, wp = h + 2 * pad, w + 2 * pad

    x = x_ref[...]                                     # native dtype (f32 or bf16)
    params = p_ref[...]                                # f32
    wt = params[:, :K]                                 # (Cb, K) depthwise conv taps
    gamma = params[:, K:K + 1]                         # (Cb, 1)
    beta = params[:, K + 1:K + 2]                      # (Cb, 1)

    # One fused pooling matmul; scale by 1/w, 1/h afterwards in f32 on the skinny result.
    pooled = jnp.dot(x, pool_ref[...], preferred_element_type=jnp.float32)  # (Cb, hp+wp)
    xh_pad = pooled[:, :hp] * jnp.float32(1.0 / w)     # (Cb, h+2p) mean over width
    xw_pad = pooled[:, hp:] * jnp.float32(1.0 / h)     # (Cb, w+2p) mean over height

    def conv_stats(vpad, length):
        conv = wt[:, 0:1] * vpad[:, 0:length]
        for k in range(1, K):                          # unrolled taps, static slices only
            conv = conv + wt[:, k:k + 1] * vpad[:, k:k + length]
        inv_l = jnp.float32(1.0 / length)
        m = jnp.sum(conv, axis=1, keepdims=True) * inv_l
        s = jnp.sum(conv * conv, axis=1, keepdims=True) * inv_l
        return conv, m, s

    conv_h, mh, sh = conv_stats(xh_pad, h)             # (Cb, h)
    conv_w, mw, sw = conv_stats(xw_pad, w)             # (Cb, w)

    # GroupNorm group reduction for BOTH branches in one skinny reduce + broadcast pair.
    stats = jnp.concatenate([mh, sh, mw, sw], axis=1)                        # (Cb, 4)
    gstats = jnp.dot(gr_ref[...], stats, preferred_element_type=jnp.float32)  # (G, 4)
    cstats = jnp.dot(gb_ref[...], gstats, preferred_element_type=jnp.float32) # (Cb, 4)

    def gate(conv, mean, msq):
        var = jnp.maximum(msq - mean * mean, 0.0)      # single-pass variance, clamped >= 0
        y = (conv - mean) * jax.lax.rsqrt(var + eps) * gamma + beta
        return jax.nn.sigmoid(y)

    a_h = gate(conv_h, cstats[:, 0:1], cstats[:, 1:2])  # (Cb, h)
    a_w = gate(conv_w, cstats[:, 2:3], cstats[:, 3:4])  # (Cb, w)

    mm_dtype = eh_ref.dtype                             # f32 for f32 inputs, bf16 for bf16
    gh = jnp.dot(a_h.astype(mm_dtype), eh_ref[...], preferred_element_type=jnp.float32)
    gw = jnp.dot(a_w.astype(mm_dtype), ew_ref[...], preferred_element_type=jnp.float32)
    o_ref[...] = (x * gh * gw).astype(o_ref.dtype)      # lane-dense store


def _device_vmem_caps():
    """(working-set budget, vmem_limit cap) in bytes; conservative for v7x / unknown."""
    try:
        kind = jax.devices()[0].device_kind.lower()
    except Exception:
        kind = ""
    if any(t in kind for t in ("v4", "v5", "v6")):
        return 64 << 20, 100 << 20      # 128 MiB physical VMEM: big blocks pay off
    return 36 << 20, 52 << 20           # v7x (64 MiB physical) or unknown


def _block_footprint_bytes(bb, *, c, hw, h, w, K, itemsize, mm_itemsize, num_groups):
    """True per-step VMEM footprint: I/O double buffers + f32 gates + constants."""
    pad = K // 2
    cb = bb * c
    g = bb * num_groups
    hpwp = (h + 2 * pad) + (w + 2 * pad)
    io = 2 * 2 * cb * hw * itemsize                     # x in + out, double-buffered
    gates = 3 * cb * hw * 4                             # gh, gw, fused gate (f32)
    consts = 2 * ((hw * hpwp + (h + w) * hw) * mm_itemsize
                  + 2 * cb * g * 4 + cb * (K + 2) * 4)  # constant operands (2 bufs each)
    skinny = 6 * cb * hpwp * 4                          # pooled / conv / stat intermediates
    return io + gates + consts + skinny


def ela_forward(x, conv_w, gamma, beta, *, num_groups=16, eps=1e-5):
    b, c, h, w = x.shape
    K = conv_w.shape[-1]
    assert c % num_groups == 0, "GroupNorm requires channel % num_groups == 0"
    cpg = c // num_groups
    pad = K // 2
    hw = h * w
    hp, wp = h + 2 * pad, w + 2 * pad

    mm_dtype = jnp.bfloat16 if x.dtype == jnp.bfloat16 else jnp.float32
    mm_itemsize = 2 if mm_dtype == jnp.bfloat16 else 4

    # ---- batch packing sized from the true footprint; keep grid >= 2 when possible ----
    budget, limit_cap = _device_vmem_caps()
    foot = functools.partial(_block_footprint_bytes, c=c, hw=hw, h=h, w=w, K=K,
                             itemsize=x.dtype.itemsize, mm_itemsize=mm_itemsize,
                             num_groups=num_groups)
    bb_cap = b if b < 2 else max(1, b // 2)            # >=2 grid steps feed both v7x TCs
    per_bb = max(1, foot(2) - foot(1))
    bb = max(1, min(bb_cap, int((budget - (foot(1) - per_bb)) // per_bb)))
    while bb > 1 and foot(bb) > budget:
        bb -= 1
    # TODO(synk): for b == 1 with very large c*h*w, add a GroupNorm-group-aligned channel
    # grid axis so a single huge batch element still splits across v7x TensorCores.

    n_steps = -(-b // bb)                              # cdiv; pad ragged batch with zeros
    b_pad = n_steps * bb
    if b_pad != b:
        x = jnp.pad(x, ((0, b_pad - b), (0, 0), (0, 0), (0, 0)))

    cb = bb * c
    g_blk = bb * num_groups
    x2 = x.reshape(b_pad * c, hw)                      # lane-dense layout (free reshape)

    # ---- host-built constant operands (DMA'd once via constant index_map) ----
    params = np.concatenate(
        [np.asarray(conv_w, np.float32).reshape(c, K),
         np.asarray(gamma, np.float32).reshape(c, 1),
         np.asarray(beta, np.float32).reshape(c, 1)], axis=1)            # (c, K+2)
    params_blk = jnp.asarray(np.tile(params, (bb, 1)))                    # (cb, K+2) f32

    rows = np.arange(hw)
    p_h = (rows[:, None] // w == np.arange(hp)[None, :] - pad)            # (hw, hp) 0/1
    p_w = (rows[:, None] % w == np.arange(wp)[None, :] - pad)             # (hw, wp) 0/1
    pool_m = jnp.asarray(np.concatenate([p_h, p_w], axis=1), dtype=mm_dtype)
    eh_m = jnp.asarray(rows[None, :] // w == np.arange(h)[:, None], dtype=mm_dtype)  # (h, hw)
    ew_m = jnp.asarray(rows[None, :] % w == np.arange(w)[:, None], dtype=mm_dtype)   # (w, hw)

    ch = np.arange(cb)
    gr_m = jnp.asarray((ch[None, :] // cpg == np.arange(g_blk)[:, None]).astype(np.float32)
                       / cpg)                                             # (G, cb) reduce
    gb_m = jnp.asarray((ch[:, None] // cpg == np.arange(g_blk)[None, :]).astype(np.float32))

    vmem_limit = int(min(limit_cap, max(32 << 20, foot(bb) + (8 << 20))))

    kernel = functools.partial(_ela_kernel, kernel_size=K, h=h, w=w, eps=eps)
    out = pl.pallas_call(
        kernel,
        out_shape=jax.ShapeDtypeStruct((b_pad * c, hw), x.dtype),
        grid=(n_steps,),
        in_specs=[
            pl.BlockSpec((cb, hw), lambda i: (i, 0)),          # x, one batch chunk
            pl.BlockSpec((cb, K + 2), lambda i: (0, 0)),       # packed conv_w/gamma/beta
            pl.BlockSpec((hw, hp + wp), lambda i: (0, 0)),     # fused pooling matrix
            pl.BlockSpec((h, hw), lambda i: (0, 0)),           # row gate broadcast
            pl.BlockSpec((w, hw), lambda i: (0, 0)),           # col gate broadcast
            pl.BlockSpec((g_blk, cb), lambda i: (0, 0)),       # group reduce
            pl.BlockSpec((cb, g_blk), lambda i: (0, 0)),       # group broadcast
        ],
        out_specs=pl.BlockSpec((cb, hw), lambda i: (i, 0)),
        compiler_params=pltpu.CompilerParams(
            dimension_semantics=("parallel",),
            vmem_limit_bytes=vmem_limit),
    )(x2, params_blk, pool_m, eh_m, ew_m, gr_m, gb_m)
    return out[:b * c].reshape(b, c, h, w)


def ela_reference(x, conv_w, gamma, beta, *, num_groups=16, eps=1e-5):
    """Pure-JAX reference matching torch semantics."""
    b, c, h, w = x.shape
    K = conv_w.shape[-1]
    pad = K // 2

    def branch(v):  # v: (b, c, L)
        L = v.shape[-1]
        vp = jnp.pad(v, ((0, 0), (0, 0), (pad, pad)))
        conv = sum(conv_w[None, :, 0, k:k + 1] * vp[:, :, k:k + L] for k in range(K))
        g = conv.reshape(b, num_groups, -1)
        mean = g.mean(axis=2, keepdims=True)
        var = ((g - mean) ** 2).mean(axis=2, keepdims=True)
        gn = ((g - mean) / jnp.sqrt(var + eps)).reshape(b, c, L)
        gn = gn * gamma[None, :, None] + beta[None, :, None]
        return jax.nn.sigmoid(gn)

    x_h = x.mean(axis=3)                       # (b, c, h)
    x_w = x.mean(axis=2)                       # (b, c, w)
    a_h = branch(x_h)[:, :, :, None]           # (b, c, h, 1)
    a_w = branch(x_w)[:, :, None, :]           # (b, c, 1, w)
    return x * a_h * a_w


if __name__ == "__main__":
    B, C, H, W = 2, 32, 16, 16        # C must be a multiple of 16 (GroupNorm(16, C))
    K = 7

    key = jax.random.PRNGKey(0)
    kx, kw, kg, kb = jax.random.split(key, 4)

    x = jax.random.normal(kx, (B, C, H, W), dtype=jnp.float32)
    # Conv1d(C, C, K, groups=C, bias=False): weight shape (C, 1, K)
    bound = 1.0 / np.sqrt(K)
    conv_w = jax.random.uniform(kw, (C, 1, K), dtype=jnp.float32,
                                minval=-bound, maxval=bound)
    # GroupNorm affine params (perturbed from torch defaults so the affine path is exercised)
    gamma = 1.0 + 0.1 * jax.random.normal(kg, (C,), dtype=jnp.float32)
    beta = 0.1 * jax.random.normal(kb, (C,), dtype=jnp.float32)

    out = ela_forward(x, conv_w, gamma, beta)
    out = jax.block_until_ready(out)

    ref = ela_reference(x, conv_w, gamma, beta)
    np.testing.assert_allclose(np.asarray(out), np.asarray(ref), rtol=1e-4, atol=1e-4)

    print("KERNEL_OK")
</pallas_src>

<mosaic_0001>
module attributes {stable_mosaic.version = 11 : i64} {
  func.func @_ela_kernel(%arg0: i32, %arg1: memref<32x256xf32, #tpu.memory_space<vmem>>, %arg2: memref<32x9xf32, #tpu.memory_space<vmem>>, %arg3: memref<256x44xf32, #tpu.memory_space<vmem>>, %arg4: memref<16x256xf32, #tpu.memory_space<vmem>>, %arg5: memref<16x256xf32, #tpu.memory_space<vmem>>, %arg6: memref<16x32xf32, #tpu.memory_space<vmem>>, %arg7: memref<32x16xf32, #tpu.memory_space<vmem>>, %arg8: memref<32x256xf32, #tpu.memory_space<vmem>>) attributes {dimension_semantics = [#tpu.dimension_semantics<parallel>], iteration_bounds = array<i64: 2>, scalar_prefetch = 0 : i64, scratch_operands = 0 : i64, tpu.core_type = #tpu.core_type<tc>, window_params = [{transform_indices = @transform_0, window_bounds = array<i64: 32, 256>}, {pipeline_mode = #tpu.pipeline_mode<synchronous>, transform_indices = @transform_1, window_bounds = array<i64: 32, 9>}, {pipeline_mode = #tpu.pipeline_mode<synchronous>, transform_indices = @transform_2, window_bounds = array<i64: 256, 44>}, {pipeline_mode = #tpu.pipeline_mode<synchronous>, transform_indices = @transform_3, window_bounds = array<i64: 16, 256>}, {pipeline_mode = #tpu.pipeline_mode<synchronous>, transform_indices = @transform_4, window_bounds = array<i64: 16, 256>}, {pipeline_mode = #tpu.pipeline_mode<synchronous>, transform_indices = @transform_5, window_bounds = array<i64: 16, 32>}, {pipeline_mode = #tpu.pipeline_mode<synchronous>, transform_indices = @transform_6, window_bounds = array<i64: 32, 16>}, {transform_indices = @transform_7, window_bounds = array<i64: 32, 256>}]} {
    %c0 = arith.constant 0 : index
    %c0_0 = arith.constant 0 : index
    %0 = vector.load %arg1[%c0, %c0_0] : memref<32x256xf32, #tpu.memory_space<vmem>>, vector<32x256xf32>
    %c0_1 = arith.constant 0 : index
    %c0_2 = arith.constant 0 : index
    %1 = vector.load %arg2[%c0_1, %c0_2] : memref<32x9xf32, #tpu.memory_space<vmem>>, vector<32x9xf32>
    %2 = vector.extract_strided_slice %1 {offsets = [0, 0], sizes = [32, 7], strides = [1, 1]} : vector<32x9xf32> to vector<32x7xf32>
    %3 = vector.extract_strided_slice %1 {offsets = [0, 7], sizes = [32, 1], strides = [1, 1]} : vector<32x9xf32> to vector<32x1xf32>
    %4 = vector.extract_strided_slice %1 {offsets = [0, 8], sizes = [32, 1], strides = [1, 1]} : vector<32x9xf32> to vector<32x1xf32>
    %c0_3 = arith.constant 0 : index
    %c0_4 = arith.constant 0 : index
    %5 = vector.load %arg3[%c0_3, %c0_4] : memref<256x44xf32, #tpu.memory_space<vmem>>, vector<256x44xf32>
    %cst = arith.constant dense<0.000000e+00> : vector<32x44xf32>
    %6 = tpu.matmul %0, %5, %cst {dimension_numbers = #tpu.dot_dimension_numbers<[1], [0], [0], [1], [0, 0, 1, 1], [], []>} : vector<32x256xf32>, vector<256x44xf32>, vector<32x44xf32> -> vector<32x44xf32>
    %7 = vector.extract_strided_slice %6 {offsets = [0, 0], sizes = [32, 22], strides = [1, 1]} : vector<32x44xf32> to vector<32x22xf32>
    %cst_5 = arith.constant 6.250000e-02 : f32
    %8 = vector.broadcast %cst_5 : f32 to vector<32x22xf32>
    %9 = arith.mulf %7, %8 : vector<32x22xf32>
    %10 = vector.extract_strided_slice %6 {offsets = [0, 22], sizes = [32, 22], strides = [1, 1]} : vector<32x44xf32> to vector<32x22xf32>
    %cst_6 = arith.constant 6.250000e-02 : f32
    %11 = vector.broadcast %cst_6 : f32 to vector<32x22xf32>
    %12 = arith.mulf %10, %11 : vector<32x22xf32>
    %13 = vector.extract_strided_slice %2 {offsets = [0, 0], sizes = [32, 1], strides = [1, 1]} : vector<32x7xf32> to vector<32x1xf32>
    %14 = vector.extract_strided_slice %9 {offsets = [0, 0], sizes = [32, 16], strides = [1, 1]} : vector<32x22xf32> to vector<32x16xf32>
    %15 = vector.broadcast %13 : vector<32x1xf32> to vector<32x16xf32>
    %16 = arith.mulf %15, %14 : vector<32x16xf32>
    %17 = vector.extract_strided_slice %2 {offsets = [0, 1], sizes = [32, 1], strides = [1, 1]} : vector<32x7xf32> to vector<32x1xf32>
    %18 = vector.extract_strided_slice %9 {offsets = [0, 1], sizes = [32, 16], strides = [1, 1]} : vector<32x22xf32> to vector<32x16xf32>
    %19 = vector.broadcast %17 : vector<32x1xf32> to vector<32x16xf32>
    %20 = arith.mulf %19, %18 : vector<32x16xf32>
    %21 = arith.addf %16, %20 : vector<32x16xf32>
    %22 = vector.extract_strided_slice %2 {offsets = [0, 2], sizes = [32, 1], strides = [1, 1]} : vector<32x7xf32> to vector<32x1xf32>
    %23 = vector.extract_strided_slice %9 {offsets = [0, 2], sizes = [32, 16], strides = [1, 1]} : vector<32x22xf32> to vector<32x16xf32>
    %24 = vector.broadcast %22 : vector<32x1xf32> to vector<32x16xf32>
    %25 = arith.mulf %24, %23 : vector<32x16xf32>
    %26 = arith.addf %21, %25 : vector<32x16xf32>
    %27 = vector.extract_strided_slice %2 {offsets = [0, 3], sizes = [32, 1], strides = [1, 1]} : vector<32x7xf32> to vector<32x1xf32>
    %28 = vector.extract_strided_slice %9 {offsets = [0, 3], sizes = [32, 16], strides = [1, 1]} : vector<32x22xf32> to vector<32x16xf32>
    %29 = vector.broadcast %27 : vector<32x1xf32> to vector<32x16xf32>
    %30 = arith.mulf %29, %28 : vector<32x16xf32>
    %31 = arith.addf %26, %30 : vector<32x16xf32>
    %32 = vector.extract_strided_slice %2 {offsets = [0, 4], sizes = [32, 1], strides = [1, 1]} : vector<32x7xf32> to vector<32x1xf32>
    %33 = vector.extract_strided_slice %9 {offsets = [0, 4], sizes = [32, 16], strides = [1, 1]} : vector<32x22xf32> to vector<32x16xf32>
    %34 = vector.broadcast %32 : vector<32x1xf32> to vector<32x16xf32>
    %35 = arith.mulf %34, %33 : vector<32x16xf32>
    %36 = arith.addf %31, %35 : vector<32x16xf32>
    %37 = vector.extract_strided_slice %2 {offsets = [0, 5], sizes = [32, 1], strides = [1, 1]} : vector<32x7xf32> to vector<32x1xf32>
    %38 = vector.extract_strided_slice %9 {offsets = [0, 5], sizes = [32, 16], strides = [1, 1]} : vector<32x22xf32> to vector<32x16xf32>
    %39 = vector.broadcast %37 : vector<32x1xf32> to vector<32x16xf32>
    %40 = arith.mulf %39, %38 : vector<32x16xf32>
    %41 = arith.addf %36, %40 : vector<32x16xf32>
    %42 = vector.extract_strided_slice %2 {offsets = [0, 6], sizes = [32, 1], strides = [1, 1]} : vector<32x7xf32> to vector<32x1xf32>
    %43 = vector.extract_strided_slice %9 {offsets = [0, 6], sizes = [32, 16], strides = [1, 1]} : vector<32x22xf32> to vector<32x16xf32>
    %44 = vector.broadcast %42 : vector<32x1xf32> to vector<32x16xf32>
    %45 = arith.mulf %44, %43 : vector<32x16xf32>
    %46 = arith.addf %41, %45 : vector<32x16xf32>
    %cst_7 = arith.constant dense<0.000000e+00> : vector<32xf32>
    %47 = vector.multi_reduction <add>, %46, %cst_7 [1] : vector<32x16xf32> to vector<32xf32>
    %48 = vector.shape_cast %47 : vector<32xf32> to vector<32x1xf32>
    %cst_8 = arith.constant 6.250000e-02 : f32
    %49 = vector.broadcast %cst_8 : f32 to vector<32x1xf32>
    %50 = arith.mulf %48, %49 : vector<32x1xf32>
    %51 = arith.mulf %46, %46 : vector<32x16xf32>
    %cst_9 = arith.constant dense<0.000000e+00> : vector<32xf32>
    %52 = vector.multi_reduction <add>, %51, %cst_9 [1] : vector<32x16xf32> to vector<32xf32>
    %53 = vector.shape_cast %52 : vector<32xf32> to vector<32x1xf32>
    %cst_10 = arith.constant 6.250000e-02 : f32
    %54 = vector.broadcast %cst_10 : f32 to vector<32x1xf32>
    %55 = arith.mulf %53, %54 : vector<32x1xf32>
    %56 = vector.extract_strided_slice %2 {offsets = [0, 0], sizes = [32, 1], strides = [1, 1]} : vector<32x7xf32> to vector<32x1xf32>
    %57 = vector.extract_strided_slice %12 {offsets = [0, 0], sizes = [32, 16], strides = [1, 1]} : vector<32x22xf32> to vector<32x16xf32>
    %58 = vector.broadcast %56 : vector<32x1xf32> to vector<32x16xf32>
    %59 = arith.mulf %58, %57 : vector<32x16xf32>
    %60 = vector.extract_strided_slice %2 {offsets = [0, 1], sizes = [32, 1], strides = [1, 1]} : vector<32x7xf32> to vector<32x1xf32>
    %61 = vector.extract_strided_slice %12 {offsets = [0, 1], sizes = [32, 16], strides = [1, 1]} : vector<32x22xf32> to vector<32x16xf32>
    %62 = vector.broadcast %60 : vector<32x1xf32> to vector<32x16xf32>
    %63 = arith.mulf %62, %61 : vector<32x16xf32>
    %64 = arith.addf %59, %63 : vector<32x16xf32>
    %65 = vector.extract_strided_slice %2 {offsets = [0, 2], sizes = [32, 1], strides = [1, 1]} : vector<32x7xf32> to vector<32x1xf32>
    %66 = vector.extract_strided_slice %12 {offsets = [0, 2], sizes = [32, 16], strides = [1, 1]} : vector<32x22xf32> to vector<32x16xf32>
    %67 = vector.broadcast %65 : vector<32x1xf32> to vector<32x16xf32>
    %68 = arith.mulf %67, %66 : vector<32x16xf32>
    %69 = arith.addf %64, %68 : vector<32x16xf32>
    %70 = vector.extract_strided_slice %2 {offsets = [0, 3], sizes = [32, 1], strides = [1, 1]} : vector<32x7xf32> to vector<32x1xf32>
    %71 = vector.extract_strided_slice %12 {offsets = [0, 3], sizes = [32, 16], strides = [1, 1]} : vector<32x22xf32> to vector<32x16xf32>
    %72 = vector.broadcast %70 : vector<32x1xf32> to vector<32x16xf32>
    %73 = arith.mulf %72, %71 : vector<32x16xf32>
    %74 = arith.addf %69, %73 : vector<32x16xf32>
    %75 = vector.extract_strided_slice %2 {offsets = [0, 4], sizes = [32, 1], strides = [1, 1]} : vector<32x7xf32> to vector<32x1xf32>
    %76 = vector.extract_strided_slice %12 {offsets = [0, 4], sizes = [32, 16], strides = [1, 1]} : vector<32x22xf32> to vector<32x16xf32>
    %77 = vector.broadcast %75 : vector<32x1xf32> to vector<32x16xf32>
    %78 = arith.mulf %77, %76 : vector<32x16xf32>
    %79 = arith.addf %74, %78 : vector<32x16xf32>
    %80 = vector.extract_strided_slice %2 {offsets = [0, 5], sizes = [32, 1], strides = [1, 1]} : vector<32x7xf32> to vector<32x1xf32>
    %81 = vector.extract_strided_slice %12 {offsets = [0, 5], sizes = [32, 16], strides = [1, 1]} : vector<32x22xf32> to vector<32x16xf32>
    %82 = vector.broadcast %80 : vector<32x1xf32> to vector<32x16xf32>
    %83 = arith.mulf %82, %81 : vector<32x16xf32>
    %84 = arith.addf %79, %83 : vector<32x16xf32>
    %85 = vector.extract_strided_slice %2 {offsets = [0, 6], sizes = [32, 1], strides = [1, 1]} : vector<32x7xf32> to vector<32x1xf32>
    %86 = vector.extract_strided_slice %12 {offsets = [0, 6], sizes = [32, 16], strides = [1, 1]} : vector<32x22xf32> to vector<32x16xf32>
    %87 = vector.broadcast %85 : vector<32x1xf32> to vector<32x16xf32>
    %88 = arith.mulf %87, %86 : vector<32x16xf32>
    %89 = arith.addf %84, %88 : vector<32x16xf32>
    %cst_11 = arith.constant dense<0.000000e+00> : vector<32xf32>
    %90 = vector.multi_reduction <add>, %89, %cst_11 [1] : vector<32x16xf32> to vector<32xf32>
    %91 = vector.shape_cast %90 : vector<32xf32> to vector<32x1xf32>
    %cst_12 = arith.constant 6.250000e-02 : f32
    %92 = vector.broadcast %cst_12 : f32 to vector<32x1xf32>
    %93 = arith.mulf %91, %92 : vector<32x1xf32>
    %94 = arith.mulf %89, %89 : vector<32x16xf32>
    %cst_13 = arith.constant dense<0.000000e+00> : vector<32xf32>
    %95 = vector.multi_reduction <add>, %94, %cst_13 [1] : vector<32x16xf32> to vector<32xf32>
    %96 = vector.shape_cast %95 : vector<32xf32> to vector<32x1xf32>
    %cst_14 = arith.constant 6.250000e-02 : f32
    %97 = vector.broadcast %cst_14 : f32 to vector<32x1xf32>
    %98 = arith.mulf %96, %97 : vector<32x1xf32>
    %99 = tpu.concatenate %50, %55, %93, %98 in 1 : vector<32x1xf32>, vector<32x1xf32>, vector<32x1xf32>, vector<32x1xf32> -> vector<32x4xf32>
    %c0_15 = arith.constant 0 : index
    %c0_16 = arith.constant 0 : index
    %100 = vector.load %arg6[%c0_15, %c0_16] : memref<16x32xf32, #tpu.memory_space<vmem>>, vector<16x32xf32>
    %cst_17 = arith.constant dense<0.000000e+00> : vector<16x4xf32>
    %101 = tpu.matmul %100, %99, %cst_17 {dimension_numbers = #tpu.dot_dimension_numbers<[1], [0], [0], [1], [0, 0, 1, 1], [], []>} : vector<16x32xf32>, vector<32x4xf32>, vector<16x4xf32> -> vector<16x4xf32>
    %c0_18 = arith.constant 0 : index
    %c0_19 = arith.constant 0 : index
    %102 = vector.load %arg7[%c0_18, %c0_19] : memref<32x16xf32, #tpu.memory_space<vmem>>, vector<32x16xf32>
    %cst_20 = arith.constant dense<0.000000e+00> : vector<32x4xf32>
    %103 = tpu.matmul %102, %101, %cst_20 {dimension_numbers = #tpu.dot_dimension_numbers<[1], [0], [0], [1], [0, 0, 1, 1], [], []>} : vector<32x16xf32>, vector<16x4xf32>, vector<32x4xf32> -> vector<32x4xf32>
    %104 = vector.extract_strided_slice %103 {offsets = [0, 0], sizes = [32, 1], strides = [1, 1]} : vector<32x4xf32> to vector<32x1xf32>
    %105 = vector.extract_strided_slice %103 {offsets = [0, 1], sizes = [32, 1], strides = [1, 1]} : vector<32x4xf32> to vector<32x1xf32>
    %106 = arith.mulf %104, %104 : vector<32x1xf32>
    %107 = arith.subf %105, %106 : vector<32x1xf32>
    %cst_21 = arith.constant 0.000000e+00 : f32
    %108 = vector.broadcast %cst_21 : f32 to vector<32x1xf32>
    %109 = arith.maximumf %107, %108 : vector<32x1xf32>
    %110 = vector.broadcast %104 : vector<32x1xf32> to vector<32x16xf32>
    %111 = arith.subf %46, %110 : vector<32x16xf32>
    %cst_22 = arith.constant 9.99999974E-6 : f32
    %112 = vector.broadcast %cst_22 : f32 to vector<32x1xf32>
    %113 = arith.addf %109, %112 : vector<32x1xf32>
    %114 = math.rsqrt %113 : vector<32x1xf32>
    %115 = vector.broadcast %114 : vector<32x1xf32> to vector<32x16xf32>
    %116 = arith.mulf %111, %115 : vector<32x16xf32>
    %117 = vector.broadcast %3 : vector<32x1xf32> to vector<32x16xf32>
    %118 = arith.mulf %116, %117 : vector<32x16xf32>
    %119 = vector.broadcast %4 : vector<32x1xf32> to vector<32x16xf32>
    %120 = arith.addf %118, %119 : vector<32x16xf32>
    %121 = arith.negf %120 : vector<32x16xf32>
    %122 = math.exp %121 : vector<32x16xf32>
    %cst_23 = arith.constant 1.000000e+00 : f32
    %123 = vector.broadcast %cst_23 : f32 to vector<32x16xf32>
    %124 = arith.addf %123, %122 : vector<32x16xf32>
    %125 = arith.divf %123, %124 : vector<32x16xf32>
    %126 = vector.extract_strided_slice %103 {offsets = [0, 2], sizes = [32, 1], strides = [1, 1]} : vector<32x4xf32> to vector<32x1xf32>
    %127 = vector.extract_strided_slice %103 {offsets = [0, 3], sizes = [32, 1], strides = [1, 1]} : vector<32x4xf32> to vector<32x1xf32>
    %128 = arith.mulf %126, %126 : vector<32x1xf32>
    %129 = arith.subf %127, %128 : vector<32x1xf32>
    %cst_24 = arith.constant 0.000000e+00 : f32
    %130 = vector.broadcast %cst_24 : f32 to vector<32x1xf32>
    %131 = arith.maximumf %129, %130 : vector<32x1xf32>
    %132 = vector.broadcast %126 : vector<32x1xf32> to vector<32x16xf32>
    %133 = arith.subf %89, %132 : vector<32x16xf32>
    %cst_25 = arith.constant 9.99999974E-6 : f32
    %134 = vector.broadcast %cst_25 : f32 to vector<32x1xf32>
    %135 = arith.addf %131, %134 : vector<32x1xf32>
    %136 = math.rsqrt %135 : vector<32x1xf32>
    %137 = vector.broadcast %136 : vector<32x1xf32> to vector<32x16xf32>
    %138 = arith.mulf %133, %137 : vector<32x16xf32>
    %139 = vector.broadcast %3 : vector<32x1xf32> to vector<32x16xf32>
    %140 = arith.mulf %138, %139 : vector<32x16xf32>
    %141 = vector.broadcast %4 : vector<32x1xf32> to vector<32x16xf32>
    %142 = arith.addf %140, %141 : vector<32x16xf32>
    %143 = arith.negf %142 : vector<32x16xf32>
    %144 = math.exp %143 : vector<32x16xf32>
    %cst_26 = arith.constant 1.000000e+00 : f32
    %145 = vector.broadcast %cst_26 : f32 to vector<32x16xf32>
    %146 = arith.addf %145, %144 : vector<32x16xf32>
    %147 = arith.divf %145, %146 : vector<32x16xf32>
    %c0_27 = arith.constant 0 : index
    %c0_28 = arith.constant 0 : index
    %148 = vector.load %arg4[%c0_27, %c0_28] : memref<16x256xf32, #tpu.memory_space<vmem>>, vector<16x256xf32>
    %cst_29 = arith.constant dense<0.000000e+00> : vector<32x256xf32>
    %149 = tpu.matmul %125, %148, %cst_29 {dimension_numbers = #tpu.dot_dimension_numbers<[1], [0], [0], [1], [0, 0, 1, 1], [], []>} : vector<32x16xf32>, vector<16x256xf32>, vector<32x256xf32> -> vector<32x256xf32>
    %c0_30 = arith.constant 0 : index
    %c0_31 = arith.constant 0 : index
    %150 = vector.load %arg5[%c0_30, %c0_31] : memref<16x256xf32, #tpu.memory_space<vmem>>, vector<16x256xf32>
    %cst_32 = arith.constant dense<0.000000e+00> : vector<32x256xf32>
    %151 = tpu.matmul %147, %150, %cst_32 {dimension_numbers = #tpu.dot_dimension_numbers<[1], [0], [0], [1], [0, 0, 1, 1], [], []>} : vector<32x16xf32>, vector<16x256xf32>, vector<32x256xf32> -> vector<32x256xf32>
    %152 = arith.mulf %0, %149 : vector<32x256xf32>
    %153 = arith.mulf %152, %151 : vector<32x256xf32>
    %c0_33 = arith.constant 0 : index
    %c0_34 = arith.constant 0 : index
    %154 = vector.load %arg8[%c0_33, %c0_34] : memref<32x256xf32, #tpu.memory_space<vmem>>, vector<32x256xf32>
    tpu.vector_store %arg8[%c0_33, %c0_34], %153 {strides = array<i32>} : memref<32x256xf32, #tpu.memory_space<vmem>>, vector<32x256xf32>,
    return
  }
  func.func @transform_0(%arg0: i32) -> (i32, i32) {
    %c0_i32 = arith.constant 0 : i32
    %c0_i32_0 = arith.constant 0 : i32
    return %arg0, %c0_i32 : i32, i32
  }
  func.func @transform_1(%arg0: i32) -> (i32, i32) {
    %c0_i32 = arith.constant 0 : i32
    %c0_i32_0 = arith.constant 0 : i32
    %c0_i32_1 = arith.constant 0 : i32
    return %c0_i32, %c0_i32_0 : i32, i32
  }
  func.func @transform_2(%arg0: i32) -> (i32, i32) {
    %c0_i32 = arith.constant 0 : i32
    %c0_i32_0 = arith.constant 0 : i32
    %c0_i32_1 = arith.constant 0 : i32
    return %c0_i32, %c0_i32_0 : i32, i32
  }
  func.func @transform_3(%arg0: i32) -> (i32, i32) {
    %c0_i32 = arith.constant 0 : i32
    %c0_i32_0 = arith.constant 0 : i32
    %c0_i32_1 = arith.constant 0 : i32
    return %c0_i32, %c0_i32_0 : i32, i32
  }
  func.func @transform_4(%arg0: i32) -> (i32, i32) {
    %c0_i32 = arith.constant 0 : i32
    %c0_i32_0 = arith.constant 0 : i32
    %c0_i32_1 = arith.constant 0 : i32
    return %c0_i32, %c0_i32_0 : i32, i32
  }
  func.func @transform_5(%arg0: i32) -> (i32, i32) {
    %c0_i32 = arith.constant 0 : i32
    %c0_i32_0 = arith.constant 0 : i32
    %c0_i32_1 = arith.constant 0 : i32
    return %c0_i32, %c0_i32_0 : i32, i32
  }
  func.func @transform_6(%arg0: i32) -> (i32, i32) {
    %c0_i32 = arith.constant 0 : i32
    %c0_i32_0 = arith.constant 0 : i32
    %c0_i32_1 = arith.constant 0 : i32
    return %c0_i32, %c0_i32_0 : i32, i32
  }
  func.func @transform_7(%arg0: i32) -> (i32, i32) {
    %c0_i32 = arith.constant 0 : i32
    %c0_i32_0 = arith.constant 0 : i32
    return %arg0, %c0_i32 : i32, i32
  }
}

</mosaic_0001>

<llo_original>
// kernel: tpu_custom_call.1
$region0: #{tpu_custom_call.1}
  #allocation0 [shape = 'u32[]', space=smem, size = 0x4, offset = 0x4, fixed_abs, tag = 'smem constant byte address 0x4 - core index']
  #allocation1 [shape = 'u32[144,128]{1,0:T(1,128)}', space=vmem, size = 0x12000, scoped, tag = 'internal scratch']
  %s0 = inlined_call_operand.vmem [shape: f32[64,256], index: 0, kind: input, shape index: {}]
  %s1 = inlined_call_operand.vmem [shape: f32[32,9], index: 1, kind: input, shape index: {}]
  %s2 = inlined_call_operand.vmem [shape: f32[256,44], index: 2, kind: input, shape index: {}]
  %s3 = inlined_call_operand.vmem [shape: f32[16,256], index: 3, kind: input, shape index: {}]
  %s4 = inlined_call_operand.vmem [shape: f32[16,256], index: 4, kind: input, shape index: {}]
  %s5 = inlined_call_operand.vmem [shape: f32[16,32], index: 5, kind: input, shape index: {}]
  %s6 = inlined_call_operand.vmem [shape: f32[32,16], index: 6, kind: input, shape index: {}]
  %s7 = inlined_call_operand.hbm [shape: f32[64,256], index: 7, kind: output, shape index: {}]
  %s8 = sld [smem:[#allocation0]]
  $region61: #{tpu_custom_call.1} parent=0
    _
  %s10 = ssub.s32 1, %s8
  %s11 = scalar_select 0, %s10, %s8
  $region1: #{tpu_custom_call.1} parent=0
    #allocation2 [shape = 'u8[65536]{0}', space=vmem, size = 0x10000, scoped, tag = 'output window, operand 0']
    #allocation3 [shape = 's32[2]{0}', space=sflag, size = 0x8, scoped, tag = 'scoped memory for tpu_custom_call.1']
    %12 = vsyncpa [#allocation3], 0
    %s13 = scalar_lea.sflag [#allocation3], 1
    %14 = vsyncpa %s13, 0
    loop: start=0, step=1, limit=4
    $region2: #{tpu_custom_call.1} parent=1 // loop_pre_header
      _
    $region3: #{tpu_custom_call.1} parent=1 // loop_header
      %s16 = sphi 0, %s20
      %p17 = scmp.ge.s32.totalorder %s16, 4
      %s26 = sphi 0, %s28
      %s29 = sphi 0, %s26
      %s30 = sphi 0, %s29
      %s46 = sphi 0, %s30
      %s50 = sphi 0, %s50
      %s52 = sphi 0, %s50
      %s53 = sphi 0, %s52
      %s67 = sphi 0, %s53
      %s71 = sphi 0, %s71
      %s73 = sphi 0, %s71
      %s74 = sphi 0, %s73
      %s88 = sphi 0, %s74
      %s92 = sphi 0, %s92
      %s94 = sphi 0, %s92
      %s95 = sphi 0, %s94
      %s109 = sphi 0, %s95
      %s113 = sphi 0, %s113
      %s115 = sphi 0, %s113
      %s116 = sphi 0, %s115
      %s130 = sphi 0, %s116
      %s134 = sphi 0, %s134
      %s136 = sphi 0, %s134
      %s137 = sphi 0, %s136
      %s151 = sphi 0, %s137
      %s155 = sphi 0, %s155
      %s157 = sphi 0, %s155
      %s158 = sphi 0, %s157
      %s172 = sphi 0, %s158
      %s178 = sphi 0, %s180
      %s181 = sphi 0, %s178
      %s182 = sphi 0, %s181
      %s198 = sphi 0, %s182
    $region4: #{tpu_custom_call.1} parent=1 // loop_header_branch
      %19 = sbr.rel (%p17) target = $region8
    $region5: #{tpu_custom_call.1} parent=1 // loop_body
      %s21 = ssub.s32 %s16, 1
      %s22 = ssub.s32 %s16, 2
      %s23 = sadd.s32 %s16, 1
      %s24 = ssub.s32 %s16, %s23
      %p25 = scmp.eq.s32.totalorder %s24, 0
      %s27 = sadd.s32 %s26, 1
      %s28 = scalar_select %p25, %s26, %s27
      %p31 = pneg %p25
      %p32 = scmp.eq.s32.totalorder %s16, 1
      %p33 = por %p31, %p32
      %p34 = scmp.ne.s32.totalorder %s26, %s29
      %p35 = scmp.eq.s32.totalorder %s16, 0
      %p36 = por %p34, %p35
      %p37 = scmp.ne.s32.totalorder %s26, %s29
      %p38 = scmp.eq.s32.totalorder %s21, 1
      %p39 = por %p37, %p38
      %p40 = scmp.ne.s32.totalorder %s29, %s30
      %p41 = scmp.eq.s32.totalorder %s21, 0
      %p42 = por %p40, %p41
      %p43 = scmp.ne.s32.totalorder %s29, %s30
      %p44 = scmp.eq.s32.totalorder %s22, 1
      %p45 = por %p43, %p44
      %p47 = scmp.ne.s32.totalorder %s30, %s46
      %p48 = scmp.eq.s32.totalorder %s22, 0
      %p49 = por %p47, %p48
      %s51 = sadd.s32 %s50, 1
      %p54 = scmp.eq.s32.totalorder %s16, 1
      %p55 = scmp.ne.s32.totalorder %s50, %s52
      %p56 = scmp.eq.s32.totalorder %s16, 0
      %p57 = por %p55, %p56
      %p58 = scmp.ne.s32.totalorder %s50, %s52
      %p59 = scmp.eq.s32.totalorder %s21, 1
      %p60 = por %p58, %p59
      %p61 = scmp.ne.s32.totalorder %s52, %s53
      %p62 = scmp.eq.s32.totalorder %s21, 0
      %p63 = por %p61, %p62
      %p64 = scmp.ne.s32.totalorder %s52, %s53
      %p65 = scmp.eq.s32.totalorder %s22, 1
      %p66 = por %p64, %p65
      %p68 = scmp.ne.s32.totalorder %s53, %s67
      %p69 = scmp.eq.s32.totalorder %s22, 0
      %p70 = por %p68, %p69
      %s72 = sadd.s32 %s71, 1
      %p75 = scmp.eq.s32.totalorder %s16, 1
      %p76 = scmp.ne.s32.totalorder %s71, %s73
      %p77 = scmp.eq.s32.totalorder %s16, 0
      %p78 = por %p76, %p77
      %p79 = scmp.ne.s32.totalorder %s71, %s73
      %p80 = scmp.eq.s32.totalorder %s21, 1
      %p81 = por %p79, %p80
      %p82 = scmp.ne.s32.totalorder %s73, %s74
      %p83 = scmp.eq.s32.totalorder %s21, 0
      %p84 = por %p82, %p83
      %p85 = scmp.ne.s32.totalorder %s73, %s74
      %p86 = scmp.eq.s32.totalorder %s22, 1
      %p87 = por %p85, %p86
      %p89 = scmp.ne.s32.totalorder %s74, %s88
      %p90 = scmp.eq.s32.totalorder %s22, 0
      %p91 = por %p89, %p90
      %s93 = sadd.s32 %s92, 1
      %p96 = scmp.eq.s32.totalorder %s16, 1
      %p97 = scmp.ne.s32.totalorder %s92, %s94
      %p98 = scmp.eq.s32.totalorder %s16, 0
      %p99 = por %p97, %p98
      %p100 = scmp.ne.s32.totalorder %s92, %s94
      %p101 = scmp.eq.s32.totalorder %s21, 1
      %p102 = por %p100, %p101
      %p103 = scmp.ne.s32.totalorder %s94, %s95
      %p104 = scmp.eq.s32.totalorder %s21, 0
      %p105 = por %p103, %p104
      %p106 = scmp.ne.s32.totalorder %s94, %s95
      %p107 = scmp.eq.s32.totalorder %s22, 1
      %p108 = por %p106, %p107
      %p110 = scmp.ne.s32.totalorder %s95, %s109
      %p111 = scmp.eq.s32.totalorder %s22, 0
      %p112 = por %p110, %p111
      %s114 = sadd.s32 %s113, 1
      %p117 = scmp.eq.s32.totalorder %s16, 1
      %p118 = scmp.ne.s32.totalorder %s113, %s115
      %p119 = scmp.eq.s32.totalorder %s16, 0
      %p120 = por %p118, %p119
      %p121 = scmp.ne.s32.totalorder %s113, %s115
      %p122 = scmp.eq.s32.totalorder %s21, 1
      %p123 = por %p121, %p122
      %p124 = scmp.ne.s32.totalorder %s115, %s116
      %p125 = scmp.eq.s32.totalorder %s21, 0
      %p126 = por %p124, %p125
      %p127 = scmp.ne.s32.totalorder %s115, %s116
      %p128 = scmp.eq.s32.totalorder %s22, 1
      %p129 = por %p127, %p128
      %p131 = scmp.ne.s32.totalorder %s116, %s130
      %p132 = scmp.eq.s32.totalorder %s22, 0
      %p133 = por %p131, %p132
      %s135 = sadd.s32 %s134, 1
      %p138 = scmp.eq.s32.totalorder %s16, 1
      %p139 = scmp.ne.s32.totalorder %s134, %s136
      %p140 = scmp.eq.s32.totalorder %s16, 0
      %p141 = por %p139, %p140
      %p142 = scmp.ne.s32.totalorder %s134, %s136
      %p143 = scmp.eq.s32.totalorder %s21, 1
      %p144 = por %p142, %p143
      %p145 = scmp.ne.s32.totalorder %s136, %s137
      %p146 = scmp.eq.s32.totalorder %s21, 0
      %p147 = por %p145, %p146
      %p148 = scmp.ne.s32.totalorder %s136, %s137
      %p149 = scmp.eq.s32.totalorder %s22, 1
      %p150 = por %p148, %p149
      %p152 = scmp.ne.s32.totalorder %s137, %s151
      %p153 = scmp.eq.s32.totalorder %s22, 0
      %p154 = por %p152, %p153
      %s156 = sadd.s32 %s155, 1
      %p159 = scmp.eq.s32.totalorder %s16, 1
      %p160 = scmp.ne.s32.totalorder %s155, %s157
      %p161 = scmp.eq.s32.totalorder %s16, 0
      %p162 = por %p160, %p161
      %p163 = scmp.ne.s32.totalorder %s155, %s157
      %p164 = scmp.eq.s32.totalorder %s21, 1
      %p165 = por %p163, %p164
      %p166 = scmp.ne.s32.totalorder %s157, %s158
      %p167 = scmp.eq.s32.totalorder %s21, 0
      %p168 = por %p166, %p167
      %p169 = scmp.ne.s32.totalorder %s157, %s158
      %p170 = scmp.eq.s32.totalorder %s22, 1
      %p171 = por %p169, %p170
      %p173 = scmp.ne.s32.totalorder %s158, %s172
      %p174 = scmp.eq.s32.totalorder %s22, 0
      %p175 = por %p173, %p174
      %s176 = ssub.s32 %s16, %s23
      %p177 = scmp.eq.s32.totalorder %s176, 0
      %s179 = sadd.s32 %s178, 1
      %s180 = scalar_select %p177, %s178, %s179
      %p183 = pneg %p177
      %p184 = scmp.eq.s32.totalorder %s16, 1
      %p185 = por %p183, %p184
      %p186 = scmp.ne.s32.totalorder %s178, %s181
      %p187 = scmp.eq.s32.totalorder %s16, 0
      %p188 = por %p186, %p187
      %p189 = scmp.ne.s32.totalorder %s178, %s181
      %p190 = scmp.eq.s32.totalorder %s21, 1
      %p191 = por %p189, %p190
      %p192 = scmp.ne.s32.totalorder %s181, %s182
      %p193 = scmp.eq.s32.totalorder %s21, 0
      %p194 = por %p192, %p193
      %p195 = scmp.ne.s32.totalorder %s181, %s182
      %p196 = scmp.eq.s32.totalorder %s22, 1
      %p197 = por %p195, %p196
      %p199 = scmp.ne.s32.totalorder %s182, %s198
      %p200 = scmp.eq.s32.totalorder %s22, 0
      %p201 = por %p199, %p200
      %p202 = scmp.le.s32.totalorder 1, %s16
      %p203 = scmp.lt.s32.totalorder %s16, 3
      %p204 = pnand %p202, %p203
      %p205 = pneg %p204
      // Predicated region
      $region9: #{tpu_custom_call.1} parent=5 // pred_check
        _
      $region10: #{tpu_custom_call.1} parent=5 // pred_check_branch
        %207 = sbr.rel (%p204) target = $region12
      $region11: #{tpu_custom_call.1} parent=5 // pred_region
        %s208 = ssub.s32 %s16, 1
        // Predicated region
        $region13: #{tpu_custom_call.1} parent=11 // pred_check
          %p209 = pneg %p63
        $region14: #{tpu_custom_call.1} parent=11 // pred_check_branch
          %211 = sbr.rel (%p209) target = $region16
        $region15: #{tpu_custom_call.1} parent=11 // pred_region
          _
        $region16: #{tpu_custom_call.1} parent=11 // pred_fallthru
          _
        // Predicated region
        $region17: #{tpu_custom_call.1} parent=11 // pred_check
          %p212 = pneg %p84
        $region18: #{tpu_custom_call.1} parent=11 // pred_check_branch
          %214 = sbr.rel (%p212) target = $region20
        $region19: #{tpu_custom_call.1} parent=11 // pred_region
          _
        $region20: #{tpu_custom_call.1} parent=11 // pred_fallthru
          _
        // Predicated region
        $region21: #{tpu_custom_call.1} parent=11 // pred_check
          %p215 = pneg %p105
        $region22: #{tpu_custom_call.1} parent=11 // pred_check_branch
          %217 = sbr.rel (%p215) target = $region24
        $region23: #{tpu_custom_call.1} parent=11 // pred_region
          _
        $region24: #{tpu_custom_call.1} parent=11 // pred_fallthru
          _
        // Predicated region
        $region25: #{tpu_custom_call.1} parent=11 // pred_check
          %p218 = pneg %p126
        $region26: #{tpu_custom_call.1} parent=11 // pred_check_branch
          %220 = sbr.rel (%p218) target = $region28
        $region27: #{tpu_custom_call.1} parent=11 // pred_region
          _
        $region28: #{tpu_custom_call.1} parent=11 // pred_fallthru
          _
        // Predicated region
        $region29: #{tpu_custom_call.1} parent=11 // pred_check
          %p221 = pneg %p147
        $region30: #{tpu_custom_call.1} parent=11 // pred_check_branch
          %223 = sbr.rel (%p221) target = $region32
        $region31: #{tpu_custom_call.1} parent=11 // pred_region
          _
        $region32: #{tpu_custom_call.1} parent=11 // pred_fallthru
          _
        // Predicated region
        $region33: #{tpu_custom_call.1} parent=11 // pred_check
          %p224 = pneg %p168
        $region34: #{tpu_custom_call.1} parent=11 // pred_check_branch
          %226 = sbr.rel (%p224) target = $region36
        $region35: #{tpu_custom_call.1} parent=11 // pred_region
          _
        $region36: #{tpu_custom_call.1} parent=11 // pred_fallthru
          _
      $region12: #{tpu_custom_call.1} parent=5 // pred_fallthru
        _
      %p227 = scmp.lt.s32.totalorder %s16, 2
      // Predicated region
      $region37: #{tpu_custom_call.1} parent=5 // pred_check
        %p228 = pneg %p227
      $region38: #{tpu_custom_call.1} parent=5 // pred_check_branch
        %230 = sbr.rel (%p228) target = $region40
      $region39: #{tpu_custom_call.1} parent=5 // pred_region
        // Predicated region
        $region41: #{tpu_custom_call.1} parent=39 // pred_check
          %p231 = pneg %p36
        $region42: #{tpu_custom_call.1} parent=39 // pred_check_branch
          %233 = sbr.rel (%p231) target = $region44
        $region43: #{tpu_custom_call.1} parent=39 // pred_region
          %s234 = smul.u32 4, %s16
          %p235 = scmp.lt.s32.totalorder %s234, 7
          %s236 = scalar_select %p235, %s234, 7
          %s237 = smul.addr %s236, 2
          %s238 = smul.addr %s237, 8
          %s239 = scalar_lea.vmem %s0, %s238
          %s240 = smul.u32 4, %s16
        $region44: #{tpu_custom_call.1} parent=39 // pred_fallthru
          _
      $region40: #{tpu_custom_call.1} parent=5 // pred_fallthru
        _
      %p241 = scmp.le.s32.totalorder 1, %s16
      %p242 = scmp.lt.s32.totalorder %s16, 3
      %p243 = pnand %p241, %p242
      %p244 = pneg %p243
      // Predicated region
      $region45: #{tpu_custom_call.1} parent=5 // pred_check
        _
      $region46: #{tpu_custom_call.1} parent=5 // pred_check_branch
        %246 = sbr.rel (%p243) target = $region48
      $region47: #{tpu_custom_call.1} parent=5 // pred_region
        %s247 = ssub.s32 %s16, 1
        %s248 = smul.u32 4, %s21
        %p249 = scmp.lt.s32.totalorder %s248, 7
        %s250 = scalar_select %p249, %s248, 7
        %s251 = smul.addr %s250, 2
        %s252 = smul.addr %s251, 8
        %s253 = scalar_lea.vmem %s0, %s252
        %p254 = pneg %p42
        %p255 = pneg %p39
        %p256 = pneg %p63
        %p257 = pneg %p60
        %p258 = pneg %p84
        %p259 = pneg %p81
        %p260 = pneg %p105
        %p261 = pneg %p102
        %p262 = pneg %p126
        %p263 = pneg %p123
        %p264 = pneg %p147
        %p265 = pneg %p144
        %p266 = pneg %p168
        %p267 = pneg %p165
        %p268 = pneg %p194
        %p269 = pneg %p191
        %s270 = sand.u32 %s181, 1
        %s271 = scalar_lea.sflag [#allocation3], %s270
        %s272 = sand.u32 %s181, 1
        %s273 = smul.addr %s272, 64
        %s274 = scalar_lea.vmem [#allocation2], %s273
        %s275 = smul.u32 4, %s21
        %p276 = scmp.lt.s32.totalorder %s275, 7
        %s277 = scalar_select %p276, %s275, 7
        %s278 = smul.addr %s277, 2
        %s279 = smul.addr %s278, 8
        %s280 = scalar_lea.vmem %s0, %s279
        %s281 = smul.u32 4, %s21
        %s282 = smul.u32 4, %s21
        %v283 = vld [vmem:[%s280] sm:$0xff]
        %v284 = vld [vmem:[%s280 + $0x8] sm:$0xff]
        %v285 = vld [vmem:[%s280 + $0x10] sm:$0xff]
        %v286 = vld [vmem:[%s280 + $0x18] sm:$0xff]
        %v287 = vld [vmem:[%s280 + $0x20] sm:$0xff]
        %v288 = vld [vmem:[%s280 + $0x28] sm:$0xff]
        %v289 = vld [vmem:[%s280 + $0x30] sm:$0xff]
        %v290 = vld [vmem:[%s280 + $0x38] sm:$0xff]
        %v291 = vld [vmem:[%s1] sm:$0xff]
        %v292 = vld [vmem:[%s1 + $0x8] sm:$0xff]
        %v293 = vld [vmem:[%s1 + $0x10] sm:$0xff]
        %v294 = vld [vmem:[%s1 + $0x18] sm:$0xff]
        %v295 = vld [vmem:[%s2] sm:$0xff]
        %v296 = vld [vmem:[%s2 + $0x8] sm:$0xff]
        %v297 = vld [vmem:[%s2 + $0x10] sm:$0xff]
        %v298 = vld [vmem:[%s2 + $0x18] sm:$0xff]
        %v299 = vld [vmem:[%s2 + $0x20] sm:$0xff]
        %v300 = vld [vmem:[%s2 + $0x28] sm:$0xff]
        %v301 = vld [vmem:[%s2 + $0x30] sm:$0xff]
        %v302 = vld [vmem:[%s2 + $0x38] sm:$0xff]
        %v303 = vld [vmem:[%s2 + $0x40] sm:$0xff]
        %v304 = vld [vmem:[%s2 + $0x48] sm:$0xff]
        %v305 = vld [vmem:[%s2 + $0x50] sm:$0xff]
        %v306 = vld [vmem:[%s2 + $0x58] sm:$0xff]
        %v307 = vld [vmem:[%s2 + $0x60] sm:$0xff]
        %v308 = vld [vmem:[%s2 + $0x68] sm:$0xff]
        %v309 = vld [vmem:[%s2 + $0x70] sm:$0xff]
        %v310 = vld [vmem:[%s2 + $0x78] sm:$0xff]
        %v311 = vld [vmem:[%s2 + $0x80] sm:$0xff]
        %v312 = vld [vmem:[%s2 + $0x88] sm:$0xff]
        %v313 = vld [vmem:[%s2 + $0x90] sm:$0xff]
        %v314 = vld [vmem:[%s2 + $0x98] sm:$0xff]
        %v315 = vld [vmem:[%s2 + $0xa0] sm:$0xff]
        %v316 = vld [vmem:[%s2 + $0xa8] sm:$0xff]
        %v317 = vld [vmem:[%s2 + $0xb0] sm:$0xff]
        %v318 = vld [vmem:[%s2 + $0xb8] sm:$0xff]
        %v319 = vld [vmem:[%s2 + $0xc0] sm:$0xff]
        %v320 = vld [vmem:[%s2 + $0xc8] sm:$0xff]
        %v321 = vld [vmem:[%s2 + $0xd0] sm:$0xff]
        %v322 = vld [vmem:[%s2 + $0xd8] sm:$0xff]
        %v323 = vld [vmem:[%s2 + $0xe0] sm:$0xff]
        %v324 = vld [vmem:[%s2 + $0xe8] sm:$0xff]
        %v325 = vld [vmem:[%s2 + $0xf0] sm:$0xff]
        %v326 = vld [vmem:[%s2 + $0xf8] sm:$0xff]
        %327 = vmatprep.subr.mxu0 0.0
        %328 = vmatpush1.msra.mxu0 %v295
        %329 = vmatprep.subr.mxu0 0.0
        %330 = vmatpush1.msra.mxu0 %v296
        %331 = vmatprep.subr.mxu0 0.0
        %332 = vmatpush1.msra.mxu0 %v297
        %333 = vmatprep.subr.mxu0 0.0
        %334 = vmatpush1.msra.mxu0 %v298
        %335 = vmatprep.subr.mxu0 0.0
        %336 = vmatpush1.msra.mxu0 %v299
        %337 = vmatprep.subr.mxu0 0.0
        %338 = vmatpush1.msra.mxu0 %v300
        %339 = vmatprep.subr.mxu0 0.0
        %340 = vmatpush1.msra.mxu0 %v301
        %341 = vmatprep.subr.mxu0 0.0
        %342 = vmatpush1.msra.mxu0 %v302
        %343 = vmatprep.subr.mxu0 0.0
        %344 = vmatpush1.msra.mxu0 %v303
        %345 = vmatprep.subr.mxu0 0.0
        %346 = vmatpush1.msra.mxu0 %v304
        %347 = vmatprep.subr.mxu0 0.0
        %348 = vmatpush1.msra.mxu0 %v305
        %349 = vmatprep.subr.mxu0 0.0
        %350 = vmatpush1.msra.mxu0 %v306
        %351 = vmatprep.subr.mxu0 0.0
        %352 = vmatpush1.msra.mxu0 %v307
        %353 = vmatprep.subr.mxu0 0.0
        %354 = vmatpush1.msra.mxu0 %v308
        %355 = vmatprep.subr.mxu0 0.0
        %356 = vmatpush1.msra.mxu0 %v309
        %357 = vmatprep.subr.mxu0 0.0
        %358 = vmatpush1.msra.mxu0 %v310
        %359 = vmatprep.subr.mxu0 0.0
        %360 = vmatpush1.msra.mxu0 %v311
        %361 = vmatprep.subr.mxu0 0.0
        %362 = vmatpush1.msra.mxu0 %v312
        %363 = vmatprep.subr.mxu0 0.0
        %364 = vmatpush1.msra.mxu0 %v313
        %365 = vmatprep.subr.mxu0 0.0
        %366 = vmatpush1.msra.mxu0 %v314
        %367 = vmatprep.subr.mxu0 0.0
        %368 = vmatpush1.msra.mxu0 %v315
        %369 = vmatprep.subr.mxu0 0.0
        %370 = vmatpush1.msra.mxu0 %v316
        %371 = vmatprep.subr.mxu0 0.0
        %372 = vmatpush1.msra.mxu0 %v317
        %373 = vmatprep.subr.mxu0 0.0
        %374 = vmatpush1.msra.mxu0 %v318
        %375 = vmatprep.subr.mxu0 0.0
        %376 = vmatpush1.msra.mxu0 %v319
        %377 = vmatprep.subr.mxu0 0.0
        %378 = vmatpush1.msra.mxu0 %v320
        %379 = vmatprep.subr.mxu0 0.0
        %380 = vmatpush1.msra.mxu0 %v321
        %381 = vmatprep.subr.mxu0 0.0
        %382 = vmatpush1.msra.mxu0 %v322
        %383 = vmatprep.subr.mxu0 0.0
        %384 = vmatpush1.msra.mxu0 %v323
        %385 = vmatprep.subr.mxu0 0.0
        %386 = vmatpush1.msra.mxu0 %v324
        %387 = vmatprep.subr.mxu0 0.0
        %388 = vmatpush1.msra.mxu0 %v325
        %389 = vmatprep.subr.mxu0 0.0
        %390 = vmatpush1.msra.mxu0 %v326
        %391 = vmatprep.mubr.f32.mxu0 %v284
        %392 = vmatmul.mubr.f32.gmra.mrb[0].mxu0 %v283
        %v393 = vpop.f32.mrb[0].mxu0
        %v394 = vadd.f32 0.0, %v393
        %v395 = vpop.f32.mrb[0].mxu0
        %396 = vmatprep.mubr.f32.mxu0 %v286
        %397 = vmatmul.mubr.f32.gmra.mrb[0].mxu0 %v285
        %v398 = vpop.f32.mrb[0].mxu0
        %v399 = vadd.f32 0.0, %v398
        %v400 = vpop.f32.mrb[0].mxu0
        %401 = vmatprep.mubr.f32.mxu0 %v288
        %402 = vmatmul.mubr.f32.gmra.mrb[0].mxu0 %v287
        %v403 = vpop.f32.mrb[0].mxu0
        %v404 = vadd.f32 0.0, %v403
        %v405 = vpop.f32.mrb[0].mxu0
        %406 = vmatprep.mubr.f32.mxu0 %v290
        %407 = vmatmul.mubr.f32.gmra.mrb[0].mxu0 %v289
        %v408 = vpop.f32.mrb[0].mxu0
        %v409 = vadd.f32 0.0, %v408
        %v410 = vpop.f32.mrb[0].mxu0
        %411 = vdwg.mxu0
        %v412 = vmul.f32 %v394, 0.0625
        %v413 = vmul.f32 %v399, 0.0625
        %v414 = vmul.f32 %v404, 0.0625
        %v415 = vmul.f32 %v409, 0.0625
        %417 = vset.pattern.permute.xlu0 0
        %418 = vperm.xlu0 %417, %v291
        %v419 = vpop.permute.xlu0 %418
        %422 = vset.pattern.permute.xlu0 0
        %423 = vperm.xlu0 %422, %v292
        %v424 = vpop.permute.xlu0 %423
        %427 = vset.pattern.permute.xlu0 0
        %428 = vperm.xlu0 %427, %v293
        %v429 = vpop.permute.xlu0 %428
        %432 = vset.pattern.permute.xlu0 0
        %433 = vperm.xlu0 %432, %v294
        %v434 = vpop.permute.xlu0 %433
        %v436 = vmul.f32 %v419, %v412
        %v437 = vmul.f32 %v424, %v413
        %v438 = vmul.f32 %v429, %v414
        %v439 = vmul.f32 %v434, %v415
        %440 = vset.pattern.permute.xlu0 1
        %441 = vperm.xlu0 %440, %v291
        %v442 = vpop.permute.xlu0 %441
        %444 = vset.pattern.permute.xlu0 1
        %445 = vperm.xlu0 %444, %v292
        %v446 = vpop.permute.xlu0 %445
        %448 = vset.pattern.permute.xlu0 1
        %449 = vperm.xlu0 %448, %v293
        %v450 = vpop.permute.xlu0 %449
        %452 = vset.pattern.permute.xlu0 1
        %453 = vperm.xlu0 %452, %v294
        %v454 = vpop.permute.xlu0 %453
        %v456 = vmul.f32 %v442, %v412
        %v457 = vmul.f32 %v446, %v413
        %v458 = vmul.f32 %v450, %v414
        %v459 = vmul.f32 %v454, %v415
        %464 = vrot.lane.b32.xlu0 %v456, 127
        %v465 = vpop.permute.xlu0 %464
        %466 = vrot.lane.b32.xlu0 %v457, 127
        %v467 = vpop.permute.xlu0 %466
        %468 = vrot.lane.b32.xlu0 %v458, 127
        %v469 = vpop.permute.xlu0 %468
        %470 = vrot.lane.b32.xlu0 %v459, 127
        %v471 = vpop.permute.xlu0 %470
        %v476 = vadd.f32 %v436, %v465
        %v477 = vadd.f32 %v437, %v467
        %v478 = vadd.f32 %v438, %v469
        %v479 = vadd.f32 %v439, %v471
        %480 = vset.pattern.permute.xlu0 2
        %481 = vperm.xlu0 %480, %v291
        %v482 = vpop.permute.xlu0 %481
        %484 = vset.pattern.permute.xlu0 2
        %485 = vperm.xlu0 %484, %v292
        %v486 = vpop.permute.xlu0 %485
        %488 = vset.pattern.permute.xlu0 2
        %489 = vperm.xlu0 %488, %v293
        %v490 = vpop.permute.xlu0 %489
        %492 = vset.pattern.permute.xlu0 2
        %493 = vperm.xlu0 %492, %v294
        %v494 = vpop.permute.xlu0 %493
        %v496 = vmul.f32 %v482, %v412
        %v497 = vmul.f32 %v486, %v413
        %v498 = vmul.f32 %v490, %v414
        %v499 = vmul.f32 %v494, %v415
        %504 = vrot.lane.b32.xlu0 %v496, 126
        %v505 = vpop.permute.xlu0 %504
        %506 = vrot.lane.b32.xlu0 %v497, 126
        %v507 = vpop.permute.xlu0 %506
        %508 = vrot.lane.b32.xlu0 %v498, 126
        %v509 = vpop.permute.xlu0 %508
        %510 = vrot.lane.b32.xlu0 %v499, 126
        %v511 = vpop.permute.xlu0 %510
        %v516 = vadd.f32 %v476, %v505
        %v517 = vadd.f32 %v477, %v507
        %v518 = vadd.f32 %v478, %v509
        %v519 = vadd.f32 %v479, %v511
        %520 = vset.pattern.permute.xlu0 3
        %521 = vperm.xlu0 %520, %v291
        %v522 = vpop.permute.xlu0 %521
        %524 = vset.pattern.permute.xlu0 3
        %525 = vperm.xlu0 %524, %v292
        %v526 = vpop.permute.xlu0 %525
        %528 = vset.pattern.permute.xlu0 3
        %529 = vperm.xlu0 %528, %v293
        %v530 = vpop.permute.xlu0 %529
        %532 = vset.pattern.permute.xlu0 3
        %533 = vperm.xlu0 %532, %v294
        %v534 = vpop.permute.xlu0 %533
        %v536 = vmul.f32 %v522, %v412
        %v537 = vmul.f32 %v526, %v413
        %v538 = vmul.f32 %v530, %v414
        %v539 = vmul.f32 %v534, %v415
        %544 = vrot.lane.b32.xlu0 %v536, 125
        %v545 = vpop.permute.xlu0 %544
        %546 = vrot.lane.b32.xlu0 %v537, 125
        %v547 = vpop.permute.xlu0 %546
        %548 = vrot.lane.b32.xlu0 %v538, 125
        %v549 = vpop.permute.xlu0 %548
        %550 = vrot.lane.b32.xlu0 %v539, 125
        %v551 = vpop.permute.xlu0 %550
        %v556 = vadd.f32 %v516, %v545
        %v557 = vadd.f32 %v517, %v547
        %v558 = vadd.f32 %v518, %v549
        %v559 = vadd.f32 %v519, %v551
        %560 = vset.pattern.permute.xlu0 4
        %561 = vperm.xlu0 %560, %v291
        %v562 = vpop.permute.xlu0 %561
        %564 = vset.pattern.permute.xlu0 4
        %565 = vperm.xlu0 %564, %v292
        %v566 = vpop.permute.xlu0 %565
        %568 = vset.pattern.permute.xlu0 4
        %569 = vperm.xlu0 %568, %v293
        %v570 = vpop.permute.xlu0 %569
        %572 = vset.pattern.permute.xlu0 4
        %573 = vperm.xlu0 %572, %v294
        %v574 = vpop.permute.xlu0 %573
        %v576 = vmul.f32 %v562, %v412
        %v577 = vmul.f32 %v566, %v413
        %v578 = vmul.f32 %v570, %v414
        %v579 = vmul.f32 %v574, %v415
        %584 = vrot.lane.b32.xlu0 %v576, 124
        %v585 = vpop.permute.xlu0 %584
        %586 = vrot.lane.b32.xlu0 %v577, 124
        %v587 = vpop.permute.xlu0 %586
        %588 = vrot.lane.b32.xlu0 %v578, 124
        %v589 = vpop.permute.xlu0 %588
        %590 = vrot.lane.b32.xlu0 %v579, 124
        %v591 = vpop.permute.xlu0 %590
        %v596 = vadd.f32 %v556, %v585
        %v597 = vadd.f32 %v557, %v587
        %v598 = vadd.f32 %v558, %v589
        %v599 = vadd.f32 %v559, %v591
        %600 = vset.pattern.permute.xlu0 5
        %601 = vperm.xlu0 %600, %v291
        %v602 = vpop.permute.xlu0 %601
        %604 = vset.pattern.permute.xlu0 5
        %605 = vperm.xlu0 %604, %v292
        %v606 = vpop.permute.xlu0 %605
        %608 = vset.pattern.permute.xlu0 5
        %609 = vperm.xlu0 %608, %v293
        %v610 = vpop.permute.xlu0 %609
        %612 = vset.pattern.permute.xlu0 5
        %613 = vperm.xlu0 %612, %v294
        %v614 = vpop.permute.xlu0 %613
        %v616 = vmul.f32 %v602, %v412
        %v617 = vmul.f32 %v606, %v413
        %v618 = vmul.f32 %v610, %v414
        %v619 = vmul.f32 %v614, %v415
        %624 = vrot.lane.b32.xlu0 %v616, 123
        %v625 = vpop.permute.xlu0 %624
        %626 = vrot.lane.b32.xlu0 %v617, 123
        %v627 = vpop.permute.xlu0 %626
        %628 = vrot.lane.b32.xlu0 %v618, 123
        %v629 = vpop.permute.xlu0 %628
        %630 = vrot.lane.b32.xlu0 %v619, 123
        %v631 = vpop.permute.xlu0 %630
        %v636 = vadd.f32 %v596, %v625
        %v637 = vadd.f32 %v597, %v627
        %v638 = vadd.f32 %v598, %v629
        %v639 = vadd.f32 %v599, %v631
        %640 = vset.pattern.permute.xlu0 6
        %641 = vperm.xlu0 %640, %v291
        %v642 = vpop.permute.xlu0 %641
        %644 = vset.pattern.permute.xlu0 6
        %645 = vperm.xlu0 %644, %v292
        %v646 = vpop.permute.xlu0 %645
        %648 = vset.pattern.permute.xlu0 6
        %649 = vperm.xlu0 %648, %v293
        %v650 = vpop.permute.xlu0 %649
        %652 = vset.pattern.permute.xlu0 6
        %653 = vperm.xlu0 %652, %v294
        %v654 = vpop.permute.xlu0 %653
        %v656 = vmul.f32 %v642, %v412
        %v657 = vmul.f32 %v646, %v413
        %v658 = vmul.f32 %v650, %v414
        %v659 = vmul.f32 %v654, %v415
        %664 = vrot.lane.b32.xlu0 %v656, 122
        %v665 = vpop.permute.xlu0 %664
        %666 = vrot.lane.b32.xlu0 %v657, 122
        %v667 = vpop.permute.xlu0 %666
        %668 = vrot.lane.b32.xlu0 %v658, 122
        %v669 = vpop.permute.xlu0 %668
        %670 = vrot.lane.b32.xlu0 %v659, 122
        %v671 = vpop.permute.xlu0 %670
        %v676 = vadd.f32 %v636, %v665
        %v677 = vadd.f32 %v637, %v667
        %v678 = vadd.f32 %v638, %v669
        %v679 = vadd.f32 %v639, %v671
        %vm680 = vcmask 130048
        %v681 = vsel %vm680, %v676, 0.0
        %682 = vadd.xlane.f32.xlu0 %v681
        %v683 = vpop.xlane.xlu0 %682
        %v684 = vsel %vm680, %v677, 0.0
        %685 = vadd.xlane.f32.xlu0 %v684
        %v686 = vpop.xlane.xlu0 %685
        %v687 = vsel %vm680, %v678, 0.0
        %688 = vadd.xlane.f32.xlu0 %v687
        %v689 = vpop.xlane.xlu0 %688
        %v690 = vsel %vm680, %v679, 0.0
        %691 = vadd.xlane.f32.xlu0 %v690
        %v692 = vpop.xlane.xlu0 %691
        %v693 = vmul.f32 %v683, 0.0625
        %v694 = vmul.f32 %v686, 0.0625
        %v695 = vmul.f32 %v689, 0.0625
        %v696 = vmul.f32 %v692, 0.0625
        %v697 = vmul.f32 %v676, %v676
        %v698 = vmul.f32 %v677, %v677
        %v699 = vmul.f32 %v678, %v678
        %v700 = vmul.f32 %v679, %v679
        %v701 = vsel %vm680, %v697, 0.0
        %702 = vadd.xlane.f32.xlu0 %v701
        %v703 = vpop.xlane.xlu0 %702
        %v704 = vsel %vm680, %v698, 0.0
        %705 = vadd.xlane.f32.xlu0 %v704
        %v706 = vpop.xlane.xlu0 %705
        %v707 = vsel %vm680, %v699, 0.0
        %708 = vadd.xlane.f32.xlu0 %v707
        %v709 = vpop.xlane.xlu0 %708
        %v710 = vsel %vm680, %v700, 0.0
        %711 = vadd.xlane.f32.xlu0 %v710
        %v712 = vpop.xlane.xlu0 %711
        %v713 = vmul.f32 %v703, 0.0625
        %v714 = vmul.f32 %v706, 0.0625
        %v715 = vmul.f32 %v709, 0.0625
        %v716 = vmul.f32 %v712, 0.0625
        %721 = vrot.lane.b32.xlu0 %v676, 106
        %v722 = vpop.permute.xlu0 %721
        %723 = vrot.lane.b32.xlu0 %v677, 106
        %v724 = vpop.permute.xlu0 %723
        %725 = vrot.lane.b32.xlu0 %v678, 106
        %v726 = vpop.permute.xlu0 %725
        %727 = vrot.lane.b32.xlu0 %v679, 106
        %v728 = vpop.permute.xlu0 %727
        %v733 = vsel %vm680, %v722, 0.0
        %734 = vadd.xlane.f32.xlu0 %v733
        %v735 = vpop.xlane.xlu0 %734
        %v736 = vsel %vm680, %v724, 0.0
        %737 = vadd.xlane.f32.xlu0 %v736
        %v738 = vpop.xlane.xlu0 %737
        %v739 = vsel %vm680, %v726, 0.0
        %740 = vadd.xlane.f32.xlu0 %v739
        %v741 = vpop.xlane.xlu0 %740
        %v742 = vsel %vm680, %v728, 0.0
        %743 = vadd.xlane.f32.xlu0 %v742
        %v744 = vpop.xlane.xlu0 %743
        %v745 = vmul.f32 %v735, 0.0625
        %v746 = vmul.f32 %v738, 0.0625
        %v747 = vmul.f32 %v741, 0.0625
        %v748 = vmul.f32 %v744, 0.0625
        %753 = vrot.lane.b32.xlu0 %v697, 106
        %v754 = vpop.permute.xlu0 %753
        %755 = vrot.lane.b32.xlu0 %v698, 106
        %v756 = vpop.permute.xlu0 %755
        %757 = vrot.lane.b32.xlu0 %v699, 106
        %v758 = vpop.permute.xlu0 %757
        %759 = vrot.lane.b32.xlu0 %v700, 106
        %v760 = vpop.permute.xlu0 %759
        %v765 = vsel %vm680, %v754, 0.0
        %766 = vadd.xlane.f32.xlu0 %v765
        %v767 = vpop.xlane.xlu0 %766
        %v768 = vsel %vm680, %v756, 0.0
        %769 = vadd.xlane.f32.xlu0 %v768
        %v770 = vpop.xlane.xlu0 %769
        %v771 = vsel %vm680, %v758, 0.0
        %772 = vadd.xlane.f32.xlu0 %v771
        %v773 = vpop.xlane.xlu0 %772
        %v774 = vsel %vm680, %v760, 0.0
        %775 = vadd.xlane.f32.xlu0 %v774
        %v776 = vpop.xlane.xlu0 %775
        %v777 = vmul.f32 %v767, 0.0625
        %v778 = vmul.f32 %v770, 0.0625
        %v779 = vmul.f32 %v773, 0.0625
        %v780 = vmul.f32 %v776, 0.0625
        %vm781 = vcmask 7168
        %v782 = vsel %vm781, %v693, %v713
        %v783 = vsel %vm781, %v694, %v714
        %v784 = vsel %vm781, %v695, %v715
        %v785 = vsel %vm781, %v696, %v716
        %vm786 = vcmask 15360
        %v787 = vsel %vm786, %v782, %v745
        %v788 = vsel %vm786, %v783, %v746
        %v789 = vsel %vm786, %v784, %v747
        %v790 = vsel %vm786, %v785, %v748
        %vm791 = vcmask 23552
        %v792 = vsel %vm791, %v787, %v777
        %v793 = vsel %vm791, %v788, %v778
        %v794 = vsel %vm791, %v789, %v779
        %v795 = vsel %vm791, %v790, %v780
        %v796 = vld [vmem:[%s5] sm:$0xff]
        %v797 = vld [vmem:[%s5 + $0x8] sm:$0xff]
        %vm798 = vcmask 261120
        %v800 = vsel %vm798, %v796, 0
        %v803 = vsel %vm798, %v797, 0
        %805 = vmatprep.subr.mxu0 0.0
        %806 = vmatpush1.msra.mxu0 %v792
        %807 = vmatprep.subr.mxu0 0.0
        %808 = vmatpush1.msra.mxu0 %v793
        %809 = vmatprep.subr.mxu0 0.0
        %810 = vmatpush1.msra.mxu0 %v794
        %811 = vmatprep.subr.mxu0 0.0
        %812 = vmatpush1.msra.mxu0 %v795
        %813 = vmatprep.subr.mxu0 0.0
        %814 = vmatpush1.msra.mxu0 0.0
        %815 = vmatprep.subr.mxu0 0.0
        %816 = vmatpush1.msra.mxu0 0.0
        %817 = vmatprep.subr.mxu0 0.0
        %818 = vmatpush1.msra.mxu0 0.0
        %819 = vmatprep.subr.mxu0 0.0
        %820 = vmatpush1.msra.mxu0 0.0
        %821 = vmatprep.subr.mxu0 0.0
        %822 = vmatpush1.msra.mxu0 0.0
        %823 = vmatprep.subr.mxu0 0.0
        %824 = vmatpush1.msra.mxu0 0.0
        %825 = vmatprep.subr.mxu0 0.0
        %826 = vmatpush1.msra.mxu0 0.0
        %827 = vmatprep.subr.mxu0 0.0
        %828 = vmatpush1.msra.mxu0 0.0
        %829 = vmatprep.subr.mxu0 0.0
        %830 = vmatpush1.msra.mxu0 0.0
        %831 = vmatprep.subr.mxu0 0.0
        %832 = vmatpush1.msra.mxu0 0.0
        %833 = vmatprep.subr.mxu0 0.0
        %834 = vmatpush1.msra.mxu0 0.0
        %835 = vmatprep.subr.mxu0 0.0
        %836 = vmatpush1.msra.mxu0 0.0
        %837 = vmatprep.subr.mxu0 0.0
        %838 = vmatpush1.msra.mxu0 0.0
        %839 = vmatprep.subr.mxu0 0.0
        %840 = vmatpush1.msra.mxu0 0.0
        %841 = vmatprep.subr.mxu0 0.0
        %842 = vmatpush1.msra.mxu0 0.0
        %843 = vmatprep.subr.mxu0 0.0
        %844 = vmatpush1.msra.mxu0 0.0
        %845 = vmatprep.subr.mxu0 0.0
        %846 = vmatpush1.msra.mxu0 0.0
        %847 = vmatprep.subr.mxu0 0.0
        %848 = vmatpush1.msra.mxu0 0.0
        %849 = vmatprep.subr.mxu0 0.0
        %850 = vmatpush1.msra.mxu0 0.0
        %851 = vmatprep.subr.mxu0 0.0
        %852 = vmatpush1.msra.mxu0 0.0
        %853 = vmatprep.subr.mxu0 0.0
        %854 = vmatpush1.msra.mxu0 0.0
        %855 = vmatprep.subr.mxu0 0.0
        %856 = vmatpush1.msra.mxu0 0.0
        %857 = vmatprep.subr.mxu0 0.0
        %858 = vmatpush1.msra.mxu0 0.0
        %859 = vmatprep.subr.mxu0 0.0
        %860 = vmatpush1.msra.mxu0 0.0
        %861 = vmatprep.subr.mxu0 0.0
        %862 = vmatpush1.msra.mxu0 0.0
        %863 = vmatprep.subr.mxu0 0.0
        %864 = vmatpush1.msra.mxu0 0.0
        %865 = vmatprep.subr.mxu0 0.0
        %866 = vmatpush1.msra.mxu0 0.0
        %867 = vmatprep.subr.mxu0 0.0
        %868 = vmatpush1.msra.mxu0 0.0
        %869 = vmatprep.mubr.f32.mxu0 0.0
        %870 = vmatmul.mubr.f32.gmra.mrb[0].mxu0 %v800
        %v871 = vpop.f32.mrb[0].mxu0
        %v872 = vadd.f32 0.0, %v871
        %v873 = vpop.f32.mrb[0].mxu0
        %874 = vmatprep.mubr.f32.mxu0 0.0
        %875 = vmatmul.mubr.f32.gmra.mrb[0].mxu0 %v803
        %v876 = vpop.f32.mrb[0].mxu0
        %v877 = vadd.f32 0.0, %v876
        %v878 = vpop.f32.mrb[0].mxu0
        %879 = vdwg.mxu0
        %v880 = vld [vmem:[%s6] sm:$0xff]
        %v881 = vld [vmem:[%s6 + $0x8] sm:$0xff]
        %v882 = vld [vmem:[%s6 + $0x10] sm:$0xff]
        %v883 = vld [vmem:[%s6 + $0x18] sm:$0xff]
        %v885 = vsel %vm680, %v880, 0
        %v888 = vsel %vm680, %v881, 0
        %v891 = vsel %vm680, %v882, 0
        %v894 = vsel %vm680, %v883, 0
        %896 = vmatprep.subr.mxu0 0.0
        %897 = vmatpush1.msra.mxu0 %v872
        %898 = vmatprep.subr.mxu0 0.0
        %899 = vmatpush1.msra.mxu0 %v877
        %900 = vmatprep.subr.mxu0 0.0
        %901 = vmatpush1.msra.mxu0 0.0
        %902 = vmatprep.subr.mxu0 0.0
        %903 = vmatpush1.msra.mxu0 0.0
        %904 = vmatprep.subr.mxu0 0.0
        %905 = vmatpush1.msra.mxu0 0.0
        %906 = vmatprep.subr.mxu0 0.0
        %907 = vmatpush1.msra.mxu0 0.0
        %908 = vmatprep.subr.mxu0 0.0
        %909 = vmatpush1.msra.mxu0 0.0
        %910 = vmatprep.subr.mxu0 0.0
        %911 = vmatpush1.msra.mxu0 0.0
        %912 = vmatprep.subr.mxu0 0.0
        %913 = vmatpush1.msra.mxu0 0.0
        %914 = vmatprep.subr.mxu0 0.0
        %915 = vmatpush1.msra.mxu0 0.0
        %916 = vmatprep.subr.mxu0 0.0
        %917 = vmatpush1.msra.mxu0 0.0
        %918 = vmatprep.subr.mxu0 0.0
        %919 = vmatpush1.msra.mxu0 0.0
        %920 = vmatprep.subr.mxu0 0.0
        %921 = vmatpush1.msra.mxu0 0.0
        %922 = vmatprep.subr.mxu0 0.0
        %923 = vmatpush1.msra.mxu0 0.0
        %924 = vmatprep.subr.mxu0 0.0
        %925 = vmatpush1.msra.mxu0 0.0
        %926 = vmatprep.subr.mxu0 0.0
        %927 = vmatpush1.msra.mxu0 0.0
        %928 = vmatprep.subr.mxu0 0.0
        %929 = vmatpush1.msra.mxu0 0.0
        %930 = vmatprep.subr.mxu0 0.0
        %931 = vmatpush1.msra.mxu0 0.0
        %932 = vmatprep.subr.mxu0 0.0
        %933 = vmatpush1.msra.mxu0 0.0
        %934 = vmatprep.subr.mxu0 0.0
        %935 = vmatpush1.msra.mxu0 0.0
        %936 = vmatprep.subr.mxu0 0.0
        %937 = vmatpush1.msra.mxu0 0.0
        %938 = vmatprep.subr.mxu0 0.0
        %939 = vmatpush1.msra.mxu0 0.0
        %940 = vmatprep.subr.mxu0 0.0
        %941 = vmatpush1.msra.mxu0 0.0
        %942 = vmatprep.subr.mxu0 0.0
        %943 = vmatpush1.msra.mxu0 0.0
        %944 = vmatprep.subr.mxu0 0.0
        %945 = vmatpush1.msra.mxu0 0.0
        %946 = vmatprep.subr.mxu0 0.0
        %947 = vmatpush1.msra.mxu0 0.0
        %948 = vmatprep.subr.mxu0 0.0
        %949 = vmatpush1.msra.mxu0 0.0
        %950 = vmatprep.subr.mxu0 0.0
        %951 = vmatpush1.msra.mxu0 0.0
        %952 = vmatprep.subr.mxu0 0.0
        %953 = vmatpush1.msra.mxu0 0.0
        %954 = vmatprep.subr.mxu0 0.0
        %955 = vmatpush1.msra.mxu0 0.0
        %956 = vmatprep.subr.mxu0 0.0
        %957 = vmatpush1.msra.mxu0 0.0
        %958 = vmatprep.subr.mxu0 0.0
        %959 = vmatpush1.msra.mxu0 0.0
        %960 = vmatprep.mubr.f32.mxu0 0.0
        %961 = vmatmul.mubr.f32.gmra.mrb[0].mxu0 %v885
        %v962 = vpop.f32.mrb[0].mxu0
        %v963 = vadd.f32 0.0, %v962
        %v964 = vpop.f32.mrb[0].mxu0
        %965 = vmatprep.mubr.f32.mxu0 0.0
        %966 = vmatmul.mubr.f32.gmra.mrb[0].mxu0 %v888
        %v967 = vpop.f32.mrb[0].mxu0
        %v968 = vadd.f32 0.0, %v967
        %v969 = vpop.f32.mrb[0].mxu0
        %970 = vmatprep.mubr.f32.mxu0 0.0
        %971 = vmatmul.mubr.f32.gmra.mrb[0].mxu0 %v891
        %v972 = vpop.f32.mrb[0].mxu0
        %v973 = vadd.f32 0.0, %v972
        %v974 = vpop.f32.mrb[0].mxu0
        %975 = vmatprep.mubr.f32.mxu0 0.0
        %976 = vmatmul.mubr.f32.gmra.mrb[0].mxu0 %v894
        %v977 = vpop.f32.mrb[0].mxu0
        %v978 = vadd.f32 0.0, %v977
        %v979 = vpop.f32.mrb[0].mxu0
        %980 = vdwg.mxu0
        %v981 = vmul.f32 %v963, %v963
        %v982 = vmul.f32 %v968, %v968
        %v983 = vmul.f32 %v973, %v973
        %v984 = vmul.f32 %v978, %v978
        %989 = vrot.lane.b32.xlu0 %v981, 1
        %v990 = vpop.permute.xlu0 %989
        %991 = vrot.lane.b32.xlu0 %v982, 1
        %v992 = vpop.permute.xlu0 %991
        %993 = vrot.lane.b32.xlu0 %v983, 1
        %v994 = vpop.permute.xlu0 %993
        %995 = vrot.lane.b32.xlu0 %v984, 1
        %v996 = vpop.permute.xlu0 %995
        %v1001 = vsub.f32 %v963, %v990
        %v1002 = vsub.f32 %v968, %v992
        %v1003 = vsub.f32 %v973, %v994
        %v1004 = vsub.f32 %v978, %v996
        %v1005 = vmax.f32 %v1001, 0.0
        %v1006 = vmax.f32 %v1002, 0.0
        %v1007 = vmax.f32 %v1003, 0.0
        %v1008 = vmax.f32 %v1004, 0.0
        %1010 = vset.pattern.permute.xlu0 0
        %1011 = vperm.xlu0 %1010, %v963
        %v1012 = vpop.permute.xlu0 %1011
        %1015 = vset.pattern.permute.xlu0 0
        %1016 = vperm.xlu0 %1015, %v968
        %v1017 = vpop.permute.xlu0 %1016
        %1020 = vset.pattern.permute.xlu0 0
        %1021 = vperm.xlu0 %1020, %v973
        %v1022 = vpop.permute.xlu0 %1021
        %1025 = vset.pattern.permute.xlu0 0
        %1026 = vperm.xlu0 %1025, %v978
        %v1027 = vpop.permute.xlu0 %1026
        %v1029 = vsub.f32 %v676, %v1012
        %v1030 = vsub.f32 %v677, %v1017
        %v1031 = vsub.f32 %v678, %v1022
        %v1032 = vsub.f32 %v679, %v1027
        %v1033 = vadd.f32 %v1005, 1e-05
        %v1034 = vadd.f32 %v1006, 1e-05
        %v1035 = vadd.f32 %v1007, 1e-05
        %v1036 = vadd.f32 %v1008, 1e-05
        %v1037 = vrsqrt.pop %v1033
        %v1038 = vrsqrt.pop %v1034
        %v1039 = vrsqrt.pop %v1035
        %v1040 = vrsqrt.pop %v1036
        %1042 = vset.pattern.permute.xlu0 1
        %1043 = vperm.xlu0 %1042, %v1037
        %v1044 = vpop.permute.xlu0 %1043
        %1047 = vset.pattern.permute.xlu0 1
        %1048 = vperm.xlu0 %1047, %v1038
        %v1049 = vpop.permute.xlu0 %1048
        %1052 = vset.pattern.permute.xlu0 1
        %1053 = vperm.xlu0 %1052, %v1039
        %v1054 = vpop.permute.xlu0 %1053
        %1057 = vset.pattern.permute.xlu0 1
        %1058 = vperm.xlu0 %1057, %v1040
        %v1059 = vpop.permute.xlu0 %1058
        %v1061 = vmul.f32 %v1029, %v1044
        %v1062 = vmul.f32 %v1030, %v1049
        %v1063 = vmul.f32 %v1031, %v1054
        %v1064 = vmul.f32 %v1032, %v1059
        %1065 = vset.pattern.permute.xlu0 7
        %1066 = vperm.xlu0 %1065, %v291
        %v1067 = vpop.permute.xlu0 %1066
        %1069 = vset.pattern.permute.xlu0 7
        %1070 = vperm.xlu0 %1069, %v292
        %v1071 = vpop.permute.xlu0 %1070
        %1073 = vset.pattern.permute.xlu0 7
        %1074 = vperm.xlu0 %1073, %v293
        %v1075 = vpop.permute.xlu0 %1074
        %1077 = vset.pattern.permute.xlu0 7
        %1078 = vperm.xlu0 %1077, %v294
        %v1079 = vpop.permute.xlu0 %1078
        %v1081 = vmul.f32 %v1061, %v1067
        %v1082 = vmul.f32 %v1062, %v1071
        %v1083 = vmul.f32 %v1063, %v1075
        %v1084 = vmul.f32 %v1064, %v1079
        %1085 = vset.pattern.permute.xlu0 8
        %1086 = vperm.xlu0 %1085, %v291
        %v1087 = vpop.permute.xlu0 %1086
        %1089 = vset.pattern.permute.xlu0 8
        %1090 = vperm.xlu0 %1089, %v292
        %v1091 = vpop.permute.xlu0 %1090
        %1093 = vset.pattern.permute.xlu0 8
        %1094 = vperm.xlu0 %1093, %v293
        %v1095 = vpop.permute.xlu0 %1094
        %1097 = vset.pattern.permute.xlu0 8
        %1098 = vperm.xlu0 %1097, %v294
        %v1099 = vpop.permute.xlu0 %1098
        %v1101 = vadd.f32 %v1081, %v1087
        %v1102 = vadd.f32 %v1082, %v1091
        %v1103 = vadd.f32 %v1083, %v1095
        %v1104 = vadd.f32 %v1084, %v1099
        %v1105 = vxor.u32 %v1101, 2147483648
        %v1106 = vxor.u32 %v1102, 2147483648
        %v1107 = vxor.u32 %v1103, 2147483648
        %v1108 = vxor.u32 %v1104, 2147483648
        %v1109 = vmul.f32 %v1105, 1.442695
        %v1110 = vpow.pop %v1109
        %v1111 = vmul.f32 %v1106, 1.442695
        %v1112 = vpow.pop %v1111
        %v1113 = vmul.f32 %v1107, 1.442695
        %v1114 = vpow.pop %v1113
        %v1115 = vmul.f32 %v1108, 1.442695
        %v1116 = vpow.pop %v1115
        %v1117 = vadd.f32 %v1110, 1.0
        %v1118 = vadd.f32 %v1112, 1.0
        %v1119 = vadd.f32 %v1114, 1.0
        %v1120 = vadd.f32 %v1116, 1.0
        %v1121 = vrcp.pop %v1117
        %v1122 = vmul.f32 1.0, %v1121
        %v1123 = vrcp.pop %v1118
        %v1124 = vmul.f32 1.0, %v1123
        %v1125 = vrcp.pop %v1119
        %v1126 = vmul.f32 1.0, %v1125
        %v1127 = vrcp.pop %v1120
        %v1128 = vmul.f32 1.0, %v1127
        %1129 = vset.pattern.permute.xlu0 2
        %1130 = vperm.xlu0 %1129, %v963
        %v1131 = vpop.permute.xlu0 %1130
        %1133 = vset.pattern.permute.xlu0 2
        %1134 = vperm.xlu0 %1133, %v968
        %v1135 = vpop.permute.xlu0 %1134
        %1137 = vset.pattern.permute.xlu0 2
        %1138 = vperm.xlu0 %1137, %v973
        %v1139 = vpop.permute.xlu0 %1138
        %1141 = vset.pattern.permute.xlu0 2
        %1142 = vperm.xlu0 %1141, %v978
        %v1143 = vpop.permute.xlu0 %1142
        %v1145 = vsub.f32 %v676, %v1131
        %v1146 = vsub.f32 %v677, %v1135
        %v1147 = vsub.f32 %v678, %v1139
        %v1148 = vsub.f32 %v679, %v1143
        %1149 = vset.pattern.permute.xlu0 3
        %1150 = vperm.xlu0 %1149, %v1037
        %v1151 = vpop.permute.xlu0 %1150
        %1153 = vset.pattern.permute.xlu0 3
        %1154 = vperm.xlu0 %1153, %v1038
        %v1155 = vpop.permute.xlu0 %1154
        %1157 = vset.pattern.permute.xlu0 3
        %1158 = vperm.xlu0 %1157, %v1039
        %v1159 = vpop.permute.xlu0 %1158
        %1161 = vset.pattern.permute.xlu0 3
        %1162 = vperm.xlu0 %1161, %v1040
        %v1163 = vpop.permute.xlu0 %1162
        %v1165 = vmul.f32 %v1145, %v1151
        %v1166 = vmul.f32 %v1146, %v1155
        %v1167 = vmul.f32 %v1147, %v1159
        %v1168 = vmul.f32 %v1148, %v1163
        %v1169 = vmul.f32 %v1165, %v1067
        %v1170 = vmul.f32 %v1166, %v1071
        %v1171 = vmul.f32 %v1167, %v1075
        %v1172 = vmul.f32 %v1168, %v1079
        %v1173 = vadd.f32 %v1169, %v1087
        %v1174 = vadd.f32 %v1170, %v1091
        %v1175 = vadd.f32 %v1171, %v1095
        %v1176 = vadd.f32 %v1172, %v1099
        %v1177 = vxor.u32 %v1173, 2147483648
        %v1178 = vxor.u32 %v1174, 2147483648
        %v1179 = vxor.u32 %v1175, 2147483648
        %v1180 = vxor.u32 %v1176, 2147483648
        %v1181 = vmul.f32 %v1177, 1.442695
        %v1182 = vpow.pop %v1181
        %v1183 = vmul.f32 %v1178, 1.442695
        %v1184 = vpow.pop %v1183
        %v1185 = vmul.f32 %v1179, 1.442695
        %v1186 = vpow.pop %v1185
        %v1187 = vmul.f32 %v1180, 1.442695
        %v1188 = vpow.pop %v1187
        %v1189 = vadd.f32 %v1182, 1.0
        %v1190 = vadd.f32 %v1184, 1.0
        %v1191 = vadd.f32 %v1186, 1.0
        %v1192 = vadd.f32 %v1188, 1.0
        %v1193 = vrcp.pop %v1189
        %v1194 = vmul.f32 1.0, %v1193
        %v1195 = vrcp.pop %v1190
        %v1196 = vmul.f32 1.0, %v1195
        %v1197 = vrcp.pop %v1191
        %v1198 = vmul.f32 1.0, %v1197
        %v1199 = vrcp.pop %v1192
        %v1200 = vmul.f32 1.0, %v1199
        %v1201 = vld [vmem:[%s3] sm:$0xff]
        %v1202 = vld [vmem:[%s3 + $0x8] sm:$0xff]
        %v1203 = vld [vmem:[%s3 + $0x10] sm:$0xff]
        %v1204 = vld [vmem:[%s3 + $0x18] sm:$0xff]
        %v1206 = vsel %vm680, %v1122, 0
        %v1209 = vsel %vm680, %v1124, 0
        %v1212 = vsel %vm680, %v1126, 0
        %v1215 = vsel %vm680, %v1128, 0
        %1217 = vmatprep.subr.mxu0 %v1202
        %1218 = vmatpush1.msra.mxu0 %v1201
        %1219 = vmatprep.subr.mxu0 %v1204
        %1220 = vmatpush1.msra.mxu0 %v1203
        %1221 = vmatprep.subr.mxu0 0.0
        %1222 = vmatpush1.msra.mxu0 0.0
        %1223 = vmatprep.subr.mxu0 0.0
        %1224 = vmatpush1.msra.mxu0 0.0
        %1225 = vmatprep.subr.mxu0 0.0
        %1226 = vmatpush1.msra.mxu0 0.0
        %1227 = vmatprep.subr.mxu0 0.0
        %1228 = vmatpush1.msra.mxu0 0.0
        %1229 = vmatprep.subr.mxu0 0.0
        %1230 = vmatpush1.msra.mxu0 0.0
        %1231 = vmatprep.subr.mxu0 0.0
        %1232 = vmatpush1.msra.mxu0 0.0
        %1233 = vmatprep.subr.mxu0 0.0
        %1234 = vmatpush1.msra.mxu0 0.0
        %1235 = vmatprep.subr.mxu0 0.0
        %1236 = vmatpush1.msra.mxu0 0.0
        %1237 = vmatprep.subr.mxu0 0.0
        %1238 = vmatpush1.msra.mxu0 0.0
        %1239 = vmatprep.subr.mxu0 0.0
        %1240 = vmatpush1.msra.mxu0 0.0
        %1241 = vmatprep.subr.mxu0 0.0
        %1242 = vmatpush1.msra.mxu0 0.0
        %1243 = vmatprep.subr.mxu0 0.0
        %1244 = vmatpush1.msra.mxu0 0.0
        %1245 = vmatprep.subr.mxu0 0.0
        %1246 = vmatpush1.msra.mxu0 0.0
        %1247 = vmatprep.subr.mxu0 0.0
        %1248 = vmatpush1.msra.mxu0 0.0
        %1249 = vmatprep.subr.mxu0 0.0
        %1250 = vmatpush1.msra.mxu0 0.0
        %1251 = vmatprep.subr.mxu0 0.0
        %1252 = vmatpush1.msra.mxu0 0.0
        %1253 = vmatprep.subr.mxu0 0.0
        %1254 = vmatpush1.msra.mxu0 0.0
        %1255 = vmatprep.subr.mxu0 0.0
        %1256 = vmatpush1.msra.mxu0 0.0
        %1257 = vmatprep.subr.mxu0 0.0
        %1258 = vmatpush1.msra.mxu0 0.0
        %1259 = vmatprep.subr.mxu0 0.0
        %1260 = vmatpush1.msra.mxu0 0.0
        %1261 = vmatprep.subr.mxu0 0.0
        %1262 = vmatpush1.msra.mxu0 0.0
        %1263 = vmatprep.subr.mxu0 0.0
        %1264 = vmatpush1.msra.mxu0 0.0
        %1265 = vmatprep.subr.mxu0 0.0
        %1266 = vmatpush1.msra.mxu0 0.0
        %1267 = vmatprep.subr.mxu0 0.0
        %1268 = vmatpush1.msra.mxu0 0.0
        %1269 = vmatprep.subr.mxu0 0.0
        %1270 = vmatpush1.msra.mxu0 0.0
        %1271 = vmatprep.subr.mxu0 0.0
        %1272 = vmatpush1.msra.mxu0 0.0
        %1273 = vmatprep.subr.mxu0 0.0
        %1274 = vmatpush1.msra.mxu0 0.0
        %1275 = vmatprep.subr.mxu0 0.0
        %1276 = vmatpush1.msra.mxu0 0.0
        %1277 = vmatprep.subr.mxu0 0.0
        %1278 = vmatpush1.msra.mxu0 0.0
        %1279 = vmatprep.subr.mxu0 0.0
        %1280 = vmatpush1.msra.mxu0 0.0
        %1281 = vmatprep.mubr.f32.mxu0 0.0
        %1282 = vmatmul.mubr.f32.gmra.mrb[0].mxu0 %v1206
        %v1283 = vpop.f32.mrb[0].mxu0
        %v1284 = vadd.f32 0.0, %v1283
        %v1285 = vpop.f32.mrb[0].mxu0
        %v1286 = vadd.f32 0.0, %v1285
        %1287 = vmatprep.mubr.f32.mxu0 0.0
        %1288 = vmatmul.mubr.f32.gmra.mrb[0].mxu0 %v1209
        %v1289 = vpop.f32.mrb[0].mxu0
        %v1290 = vadd.f32 0.0, %v1289
        %v1291 = vpop.f32.mrb[0].mxu0
        %v1292 = vadd.f32 0.0, %v1291
        %1293 = vmatprep.mubr.f32.mxu0 0.0
        %1294 = vmatmul.mubr.f32.gmra.mrb[0].mxu0 %v1212
        %v1295 = vpop.f32.mrb[0].mxu0
        %v1296 = vadd.f32 0.0, %v1295
        %v1297 = vpop.f32.mrb[0].mxu0
        %v1298 = vadd.f32 0.0, %v1297
        %1299 = vmatprep.mubr.f32.mxu0 0.0
        %1300 = vmatmul.mubr.f32.gmra.mrb[0].mxu0 %v1215
        %v1301 = vpop.f32.mrb[0].mxu0
        %v1302 = vadd.f32 0.0, %v1301
        %v1303 = vpop.f32.mrb[0].mxu0
        %v1304 = vadd.f32 0.0, %v1303
        %1305 = vdwg.mxu0
        %v1306 = vld [vmem:[%s4] sm:$0xff]
        %v1307 = vld [vmem:[%s4 + $0x8] sm:$0xff]
        %v1308 = vld [vmem:[%s4 + $0x10] sm:$0xff]
        %v1309 = vld [vmem:[%s4 + $0x18] sm:$0xff]
        %1314 = vrot.lane.b32.xlu0 %v1194, 106
        %v1315 = vpop.permute.xlu0 %1314
        %1316 = vrot.lane.b32.xlu0 %v1196, 106
        %v1317 = vpop.permute.xlu0 %1316
        %1318 = vrot.lane.b32.xlu0 %v1198, 106
        %v1319 = vpop.permute.xlu0 %1318
        %1320 = vrot.lane.b32.xlu0 %v1200, 106
        %v1321 = vpop.permute.xlu0 %1320
        %v1322 = vsel %vm680, %v1315, 0
        %v1324 = vsel %vm680, %v1317, 0
        %v1326 = vsel %vm680, %v1319, 0
        %v1328 = vsel %vm680, %v1321, 0
        %1330 = vmatprep.subr.mxu0 %v1307
        %1331 = vmatpush1.msra.mxu0 %v1306
        %1332 = vmatprep.subr.mxu0 %v1309
        %1333 = vmatpush1.msra.mxu0 %v1308
        %1334 = vmatprep.subr.mxu0 0.0
        %1335 = vmatpush1.msra.mxu0 0.0
        %1336 = vmatprep.subr.mxu0 0.0
        %1337 = vmatpush1.msra.mxu0 0.0
        %1338 = vmatprep.subr.mxu0 0.0
        %1339 = vmatpush1.msra.mxu0 0.0
        %1340 = vmatprep.subr.mxu0 0.0
        %1341 = vmatpush1.msra.mxu0 0.0
        %1342 = vmatprep.subr.mxu0 0.0
        %1343 = vmatpush1.msra.mxu0 0.0
        %1344 = vmatprep.subr.mxu0 0.0
        %1345 = vmatpush1.msra.mxu0 0.0
        %1346 = vmatprep.subr.mxu0 0.0
        %1347 = vmatpush1.msra.mxu0 0.0
        %1348 = vmatprep.subr.mxu0 0.0
        %1349 = vmatpush1.msra.mxu0 0.0
        %1350 = vmatprep.subr.mxu0 0.0
        %1351 = vmatpush1.msra.mxu0 0.0
        %1352 = vmatprep.subr.mxu0 0.0
        %1353 = vmatpush1.msra.mxu0 0.0
        %1354 = vmatprep.subr.mxu0 0.0
        %1355 = vmatpush1.msra.mxu0 0.0
        %1356 = vmatprep.subr.mxu0 0.0
        %1357 = vmatpush1.msra.mxu0 0.0
        %1358 = vmatprep.subr.mxu0 0.0
        %1359 = vmatpush1.msra.mxu0 0.0
        %1360 = vmatprep.subr.mxu0 0.0
        %1361 = vmatpush1.msra.mxu0 0.0
        %1362 = vmatprep.subr.mxu0 0.0
        %1363 = vmatpush1.msra.mxu0 0.0
        %1364 = vmatprep.subr.mxu0 0.0
        %1365 = vmatpush1.msra.mxu0 0.0
        %1366 = vmatprep.subr.mxu0 0.0
        %1367 = vmatpush1.msra.mxu0 0.0
        %1368 = vmatprep.subr.mxu0 0.0
        %1369 = vmatpush1.msra.mxu0 0.0
        %1370 = vmatprep.subr.mxu0 0.0
        %1371 = vmatpush1.msra.mxu0 0.0
        %1372 = vmatprep.subr.mxu0 0.0
        %1373 = vmatpush1.msra.mxu0 0.0
        %1374 = vmatprep.subr.mxu0 0.0
        %1375 = vmatpush1.msra.mxu0 0.0
        %1376 = vmatprep.subr.mxu0 0.0
        %1377 = vmatpush1.msra.mxu0 0.0
        %1378 = vmatprep.subr.mxu0 0.0
        %1379 = vmatpush1.msra.mxu0 0.0
        %1380 = vmatprep.subr.mxu0 0.0
        %1381 = vmatpush1.msra.mxu0 0.0
        %1382 = vmatprep.subr.mxu0 0.0
        %1383 = vmatpush1.msra.mxu0 0.0
        %1384 = vmatprep.subr.mxu0 0.0
        %1385 = vmatpush1.msra.mxu0 0.0
        %1386 = vmatprep.subr.mxu0 0.0
        %1387 = vmatpush1.msra.mxu0 0.0
        %1388 = vmatprep.subr.mxu0 0.0
        %1389 = vmatpush1.msra.mxu0 0.0
        %1390 = vmatprep.subr.mxu0 0.0
        %1391 = vmatpush1.msra.mxu0 0.0
        %1392 = vmatprep.subr.mxu0 0.0
        %1393 = vmatpush1.msra.mxu0 0.0
        %1394 = vmatprep.mubr.f32.mxu0 0.0
        %1395 = vmatmul.mubr.f32.gmra.mrb[0].mxu0 %v1322
        %v1396 = vpop.f32.mrb[0].mxu0
        %v1397 = vadd.f32 0.0, %v1396
        %v1398 = vpop.f32.mrb[0].mxu0
        %v1399 = vadd.f32 0.0, %v1398
        %1400 = vmatprep.mubr.f32.mxu0 0.0
        %1401 = vmatmul.mubr.f32.gmra.mrb[0].mxu0 %v1324
        %v1402 = vpop.f32.mrb[0].mxu0
        %v1403 = vadd.f32 0.0, %v1402
        %v1404 = vpop.f32.mrb[0].mxu0
        %v1405 = vadd.f32 0.0, %v1404
        %1406 = vmatprep.mubr.f32.mxu0 0.0
        %1407 = vmatmul.mubr.f32.gmra.mrb[0].mxu0 %v1326
        %v1408 = vpop.f32.mrb[0].mxu0
        %v1409 = vadd.f32 0.0, %v1408
        %v1410 = vpop.f32.mrb[0].mxu0
        %v1411 = vadd.f32 0.0, %v1410
        %1412 = vmatprep.mubr.f32.mxu0 0.0
        %1413 = vmatmul.mubr.f32.gmra.mrb[0].mxu0 %v1328
        %v1414 = vpop.f32.mrb[0].mxu0
        %v1415 = vadd.f32 0.0, %v1414
        %v1416 = vpop.f32.mrb[0].mxu0
        %v1417 = vadd.f32 0.0, %v1416
        %1418 = vdwg.mxu0
        %v1419 = vmul.f32 %v283, %v1284
        %v1420 = vmul.f32 %v284, %v1286
        %v1421 = vmul.f32 %v285, %v1290
        %v1422 = vmul.f32 %v286, %v1292
        %v1423 = vmul.f32 %v287, %v1296
        %v1424 = vmul.f32 %v288, %v1298
        %v1425 = vmul.f32 %v289, %v1302
        %v1426 = vmul.f32 %v290, %v1304
        %v1427 = vmul.f32 %v1419, %v1397
        %v1428 = vmul.f32 %v1420, %v1399
        %v1429 = vmul.f32 %v1421, %v1403
        %v1430 = vmul.f32 %v1422, %v1405
        %v1431 = vmul.f32 %v1423, %v1409
        %v1432 = vmul.f32 %v1424, %v1411
        %v1433 = vmul.f32 %v1425, %v1415
        %v1434 = vmul.f32 %v1426, %v1417
        %1435 = vst [vmem:[%s274] sm:$0xff] %v1427
        %1436 = vst [vmem:[%s274 + $0x8] sm:$0xff] %v1428
        %1437 = vst [vmem:[%s274 + $0x10] sm:$0xff] %v1429
        %1438 = vst [vmem:[%s274 + $0x18] sm:$0xff] %v1430
        %1439 = vst [vmem:[%s274 + $0x20] sm:$0xff] %v1431
        %1440 = vst [vmem:[%s274 + $0x28] sm:$0xff] %v1432
        %1441 = vst [vmem:[%s274 + $0x30] sm:$0xff] %v1433
        %1442 = vst [vmem:[%s274 + $0x38] sm:$0xff] %v1434
        %s1443 = sand.u32 %s181, 1
        %s1444 = scalar_lea.sflag [#allocation3], %s1443
        %s1445 = sand.u32 %s181, 1
        %s1446 = smul.addr %s1445, 64
        %s1447 = scalar_lea.vmem [#allocation2], %s1446
        // Predicated region
        $region49: #{tpu_custom_call.1} parent=47 // pred_check
          %p1448 = pneg %p191
        $region50: #{tpu_custom_call.1} parent=47 // pred_check_branch
          %1450 = sbr.rel (%p1448) target = $region52
        $region51: #{tpu_custom_call.1} parent=47 // pred_region
          %s1451 = smul.u32 4, %s21
          %s1453 = ssub.s32 1024, 1024
          %1454 = vsyncadd %s1444, %s1453
          %s1455 = smul.addr %s1451, 2
          %s1456 = smul.addr %s1455, 128
          %s1457 = scalar_lea.hbm %s7, %s1456
          %s1458 = sshll.u32 %s1447, 4
          %s1459 = int_to_ptr.vmem [resolvable:$true] %s1458
          %1464 = dma.vmem_to_hbm [thread:$0]  %s1459, 1024, %s1457, %s1444, 256, 256, 16
        $region52: #{tpu_custom_call.1} parent=47 // pred_fallthru
          _
      $region48: #{tpu_custom_call.1} parent=5 // pred_fallthru
        _
      %p1465 = scmp.le.s32.totalorder 2, %s16
      // Predicated region
      $region53: #{tpu_custom_call.1} parent=5 // pred_check
        %p1466 = pneg %p1465
      $region54: #{tpu_custom_call.1} parent=5 // pred_check_branch
        %1468 = sbr.rel (%p1466) target = $region56
      $region55: #{tpu_custom_call.1} parent=5 // pred_region
        %s1469 = ssub.s32 %s16, 2
        // Predicated region
        $region57: #{tpu_custom_call.1} parent=55 // pred_check
          %p1470 = pneg %p197
        $region58: #{tpu_custom_call.1} parent=55 // pred_check_branch
          %1472 = sbr.rel (%p1470) target = $region60
        $region59: #{tpu_custom_call.1} parent=55 // pred_region
          %s1473 = sand.u32 %s182, 1
          %s1474 = scalar_lea.sflag [#allocation3], %s1473
          %s1475 = sand.u32 %s182, 1
          %s1476 = smul.addr %s1475, 64
          %s1477 = scalar_lea.vmem [#allocation2], %s1476
          %1478 = dma.done %s1474, 1024
        $region60: #{tpu_custom_call.1} parent=55 // pred_fallthru
          _
      $region56: #{tpu_custom_call.1} parent=5 // pred_fallthru
        _
    $region6: #{tpu_custom_call.1} parent=1 // loop_footer
      %s20 = sadd.s32 1, %s16
    $region7: #{tpu_custom_call.1} parent=1 // loop_footer_branch
      %15 = sbr.rel target = $region3
    $region8: #{tpu_custom_call.1} parent=1 // loop_exit
      _
    %1479 = vsyncpa [#allocation3], 1
    %s1480 = scalar_lea.sflag [#allocation3], 1
    %1481 = vsyncpa %s1480, 1

</llo_original>
